<compile_context>
chip_gen: v6e
topology: v6e:2x2x1
jax: 0.10.0
libtpu: 0.0.40
codegen_flags: <defaults>
</compile_context>

<pallas_src>
import jax
import jax.numpy as jnp
from jax.experimental import pallas as pl
from jax.experimental.pallas import tpu as pltpu

BN_EPS = 1e-5


def _round_up(x, m):
    return ((x + m - 1) // m) * m


# ---------------------------------------------------------------------------
# Fused kernel: conv-tap matmul + SiLU + spatial-sum accumulator + (BN- and
# 1/S-folded) linear head epilogue.
# ---------------------------------------------------------------------------
def _make_fused_kernel(s_actual, s_padded, tile_s, tile_b):
    need_mask = (s_padded != s_actual)

    def kernel(taps_ref, wconv_ref, bconv_ref, wemb_ref, bemb_ref, o_ref, acc_ref):
        # taps_ref : [TB, TS, K]  (bf16, streamed)
        # wconv_ref: [K, C]       (bf16, resident)
        # bconv_ref: [1, C]       (f32)
        # wemb_ref : [C, D]       (f32, BN + 1/S folded in)
        # bemb_ref : [1, D]       (f32, BN folded in)
        # o_ref    : [TB, 1, D]
        # acc_ref  : [TB, C]      (f32 VMEM scratch, persists across spatial tiles)
        s = pl.program_id(1)
        n_s = pl.num_programs(1)

        @pl.when(s == 0)
        def _():
            acc_ref[...] = jnp.zeros_like(acc_ref)

        w = wconv_ref[...]
        bias = bconv_ref[...]

        if need_mask:
            row = s * tile_s + jax.lax.broadcasted_iota(jnp.int32, (tile_s, 1), 0)
            valid = row < s_actual                               # [TS, 1]

        # Static unroll over the batch tile: each iteration is a plain 2-D
        # MXU matmul [TS, K] @ [K, C] with fp32 accumulation.
        parts = []
        for bb in range(tile_b):
            conv = jnp.dot(taps_ref[bb], w,
                           preferred_element_type=jnp.float32) + bias
            act = conv * jax.nn.sigmoid(conv)                    # SiLU (fp32)
            if need_mask:
                act = jnp.where(valid, act, 0.0)
            parts.append(jnp.sum(act, axis=0, keepdims=True))    # [1, C]

        part = parts[0] if tile_b == 1 else jnp.concatenate(parts, axis=0)
        acc_ref[...] += part                                     # partial pool

        @pl.when(s == n_s - 1)
        def _():
            # dropout: eval-mode identity (see TODO at top).
            # 1/S and BatchNorm are pre-folded into wemb/bemb on the host.
            emb = jnp.dot(acc_ref[...], wemb_ref[...],
                          preferred_element_type=jnp.float32) + bemb_ref[...]
            o_ref[...] = emb.reshape(o_ref.shape).astype(o_ref.dtype)

    return kernel


# ---------------------------------------------------------------------------
# Module-level forward
# ---------------------------------------------------------------------------
def efficientnetv2_embeddings(x_nchw, params, *, stride=2, pad=1,
                              tile_s=1024, tile_b=8):
    """x_nchw: [B, Cin, H, W] float32 -> embeddings [B, output_dim] float32."""
    w_conv = params["w_conv"]
    B, Cin, H, W = x_nchw.shape
    Cout, _, KH, KW = w_conv.shape
    Ho = (H + 2 * pad - KH) // stride + 1
    Wo = (W + 2 * pad - KW) // stride + 1
    S = Ho * Wo
    K = KH * KW * Cin
    D = params["w_emb"].shape[1]

    # --- glue: 9 stride-2 conv taps, channel-concatenated, cast to bf16 ------
    x = jnp.transpose(x_nchw, (0, 2, 3, 1))                         # NHWC
    xp = jnp.pad(x, ((0, 0), (pad, pad), (pad, pad), (0, 0)))
    cols = []
    for i in range(KH):
        for j in range(KW):
            cols.append(xp[:, i:i + stride * Ho:stride, j:j + stride * Wo:stride, :])
    taps = jnp.concatenate(cols, axis=-1).reshape(B, S, K).astype(jnp.bfloat16)

    # --- tiling -----------------------------------------------------------
    TB = max(1, min(int(tile_b), B))
    B_pad = _round_up(B, TB)
    TS = _round_up(min(int(tile_s), _round_up(S, 8)), 8)
    S_pad = _round_up(S, TS)
    if (B_pad != B) or (S_pad != S):
        taps = jnp.pad(taps, ((0, B_pad - B), (0, S_pad - S), (0, 0)))

    # conv weight [Cout, Cin, kh, kw] -> [kh*kw*Cin, Cout] (bf16; fp32 accum).
    w2d = jnp.transpose(w_conv, (2, 3, 1, 0)).reshape(K, Cout).astype(jnp.bfloat16)
    b2d = params["b_conv"].reshape(1, Cout).astype(jnp.float32)

    # --- fold eval-mode BatchNorm1d AND 1/S pooling into the head (host) ----
    inv_std = jax.lax.rsqrt(params["bn_var"].astype(jnp.float32) + BN_EPS)
    scale = params["bn_gamma"] * inv_std                            # [C]
    shift = params["bn_beta"] - params["bn_mean"] * scale           # [C]
    inv_s = jnp.float32(1.0 / float(S))
    w_eff = (inv_s * scale[:, None] * params["w_emb"]).astype(jnp.float32)   # [C, D]
    b_eff = (params["b_emb"] + shift @ params["w_emb"]).reshape(1, D).astype(jnp.float32)

    kernel = _make_fused_kernel(S, S_pad, TS, TB)
    grid = (B_pad // TB, S_pad // TS)

    out = pl.pallas_call(
        kernel,
        out_shape=jax.ShapeDtypeStruct((B_pad, 1, D), jnp.float32),
        grid=grid,
        in_specs=[
            pl.BlockSpec((TB, TS, K), lambda g, s: (g, s, 0)),      # streamed taps
            pl.BlockSpec((K, Cout), lambda g, s: (0, 0)),           # resident conv W
            pl.BlockSpec((1, Cout), lambda g, s: (0, 0)),           # conv bias
            pl.BlockSpec((Cout, D), lambda g, s: (0, 0)),           # BN-folded head W
            pl.BlockSpec((1, D), lambda g, s: (0, 0)),              # BN-folded head b
        ],
        out_specs=pl.BlockSpec((TB, 1, D), lambda g, s: (g, 0, 0)),
        scratch_shapes=[pltpu.VMEM((TB, Cout), jnp.float32)],
        compiler_params=pltpu.CompilerParams(
            dimension_semantics=("parallel", "arbitrary")),
    )(taps, w2d, b2d, w_eff, b_eff)
    return out.reshape(B_pad, D)[:B]


# ---------------------------------------------------------------------------
# Pure-JAX fp32 reference (same math, unfused) for a correctness check.
# ---------------------------------------------------------------------------
def _reference_forward(x_nchw, params, *, stride=2, pad=1):
    B, Cin, H, W = x_nchw.shape
    w_conv = params["w_conv"]
    Cout, _, KH, KW = w_conv.shape
    Ho = (H + 2 * pad - KH) // stride + 1
    Wo = (W + 2 * pad - KW) // stride + 1
    x = jnp.transpose(x_nchw, (0, 2, 3, 1))
    xp = jnp.pad(x, ((0, 0), (pad, pad), (pad, pad), (0, 0)))
    cols = []
    for i in range(KH):
        for j in range(KW):
            cols.append(xp[:, i:i + stride * Ho:stride, j:j + stride * Wo:stride, :])
    taps = jnp.concatenate(cols, axis=-1).reshape(B, Ho * Wo, KH * KW * Cin)
    w2d = jnp.transpose(w_conv, (2, 3, 1, 0)).reshape(KH * KW * Cin, Cout)
    conv = taps @ w2d + params["b_conv"]
    feat = conv * jax.nn.sigmoid(conv)                              # SiLU
    pooled = feat.mean(axis=1)
    inv_std = jax.lax.rsqrt(params["bn_var"] + BN_EPS)
    norm = (pooled - params["bn_mean"]) * inv_std * params["bn_gamma"] + params["bn_beta"]
    return norm @ params["w_emb"] + params["b_emb"]


if __name__ == "__main__":
    key = jax.random.PRNGKey(0)
    ks = jax.random.split(key, 9)

    # Small shapes consistent with the module's forward (image in, [B, 384] out).
    B, Cin, H, W = 2, 3, 32, 32
    feature_dim = 128          # stand-in for backbone feature_info[-1]['num_chs']
    output_dim = 384

    x = jax.random.normal(ks[0], (B, Cin, H, W), jnp.float32)

    params = {
        # stem conv (PyTorch-layout weight [Cout, Cin, kh, kw])
        "w_conv": 0.1 * jax.random.normal(ks[1], (feature_dim, Cin, 3, 3), jnp.float32),
        "b_conv": 0.1 * jax.random.normal(ks[2], (feature_dim,), jnp.float32),
        # BatchNorm1d(feature_dim), eval-mode running stats
        "bn_gamma": 1.0 + 0.1 * jax.random.normal(ks[3], (feature_dim,), jnp.float32),
        "bn_beta": 0.1 * jax.random.normal(ks[4], (feature_dim,), jnp.float32),
        "bn_mean": 0.1 * jax.random.normal(ks[5], (feature_dim,), jnp.float32),
        "bn_var": 1.0 + 0.1 * jnp.abs(jax.random.normal(ks[6], (feature_dim,), jnp.float32)),
        # Linear(feature_dim -> output_dim); stored as [C, D] (= PyTorch weight.T)
        "w_emb": 0.05 * jax.random.normal(ks[7], (feature_dim, output_dim), jnp.float32),
        "b_emb": 0.05 * jax.random.normal(ks[8], (output_dim,), jnp.float32),
    }

    # tile_s=96 so the test exercises multiple spatial tiles AND the padded-row
    # mask (S = 16*16 = 256 -> 3 tiles, last one partially padded); tile_b=2
    # exercises the batch-tiled accumulator path.
    emb = efficientnetv2_embeddings(x, params, tile_s=96, tile_b=2)
    emb = jax.block_until_ready(emb)

    assert emb.shape == (B, output_dim), emb.shape
    assert emb.dtype == jnp.float32

    ref = jax.block_until_ready(_reference_forward(x, params))
    assert bool(jnp.allclose(emb, ref, atol=3e-2, rtol=3e-2)), (
        float(jnp.max(jnp.abs(emb - ref))))

    print("KERNEL_OK")
</pallas_src>

<mosaic_0001>
module attributes {stable_mosaic.version = 11 : i64} {
  func.func @kernel(%arg0: i32, %arg1: i32, %arg2: memref<2x96x27xbf16, #tpu.memory_space<vmem>>, %arg3: memref<27x128xbf16, #tpu.memory_space<vmem>>, %arg4: memref<1x128xf32, #tpu.memory_space<vmem>>, %arg5: memref<128x384xf32, #tpu.memory_space<vmem>>, %arg6: memref<1x384xf32, #tpu.memory_space<vmem>>, %arg7: memref<2x1x384xf32, #tpu.memory_space<vmem>>, %arg8: memref<2x128xf32, #tpu.memory_space<vmem>>) attributes {dimension_semantics = [#tpu.dimension_semantics<parallel>, #tpu.dimension_semantics<arbitrary>], iteration_bounds = array<i64: 1, 3>, scalar_prefetch = 0 : i64, scratch_operands = 1 : i64, tpu.core_type = #tpu.core_type<tc>, window_params = [{transform_indices = @transform_0, window_bounds = array<i64: 2, 96, 27>}, {pipeline_mode = #tpu.pipeline_mode<synchronous>, transform_indices = @transform_1, window_bounds = array<i64: 27, 128>}, {pipeline_mode = #tpu.pipeline_mode<synchronous>, transform_indices = @transform_2, window_bounds = array<i64: 1, 128>}, {pipeline_mode = #tpu.pipeline_mode<synchronous>, transform_indices = @transform_3, window_bounds = array<i64: 128, 384>}, {pipeline_mode = #tpu.pipeline_mode<synchronous>, transform_indices = @transform_4, window_bounds = array<i64: 1, 384>}, {transform_indices = @transform_5, window_bounds = array<i64: 2, 1, 384>}]} {
    %c0_i32 = arith.constant 0 : i32
    %0 = arith.cmpi eq, %arg1, %c0_i32 : i32
    %1 = arith.extui %0 : i1 to i32
    %c0_i32_0 = arith.constant 0 : i32
    %2 = arith.cmpi ne, %1, %c0_i32_0 : i32
    scf.if %2 {
      %cst_21 = arith.constant 0.000000e+00 : f32
      %52 = vector.broadcast %cst_21 : f32 to vector<2x128xf32>
      %c0_22 = arith.constant 0 : index
      %c0_23 = arith.constant 0 : index
      %53 = vector.load %arg8[%c0_22, %c0_23] : memref<2x128xf32, #tpu.memory_space<vmem>>, vector<2x128xf32>
      tpu.vector_store %arg8[%c0_22, %c0_23], %52 {strides = array<i32>} : memref<2x128xf32, #tpu.memory_space<vmem>>, vector<2x128xf32>,
    } else {
    }
    %c0 = arith.constant 0 : index
    %c0_1 = arith.constant 0 : index
    %3 = vector.load %arg3[%c0, %c0_1] : memref<27x128xbf16, #tpu.memory_space<vmem>>, vector<27x128xbf16>
    %c0_2 = arith.constant 0 : index
    %c0_3 = arith.constant 0 : index
    %4 = vector.load %arg4[%c0_2, %c0_3] : memref<1x128xf32, #tpu.memory_space<vmem>>, vector<1x128xf32>
    %c96_i32 = arith.constant 96 : i32
    %5 = arith.muli %arg1, %c96_i32 : i32
    %6 = tpu.iota {dimensions = array<i32: 0>} : vector<96x1xi32>
    %7 = vector.broadcast %5 : i32 to vector<96x1xi32>
    %8 = arith.addi %7, %6 : vector<96x1xi32>
    %c256_i32 = arith.constant 256 : i32
    %9 = vector.broadcast %c256_i32 : i32 to vector<96x1xi32>
    %10 = arith.cmpi slt, %8, %9 : vector<96x1xi32>
    %c0_4 = arith.constant 0 : index
    %c0_5 = arith.constant 0 : index
    %c0_6 = arith.constant 0 : index
    %11 = vector.load %arg2[%c0_4, %c0_5, %c0_6] : memref<2x96x27xbf16, #tpu.memory_space<vmem>>, vector<1x96x27xbf16>
    %12 = vector.shape_cast %11 : vector<1x96x27xbf16> to vector<96x27xbf16>
    %cst = arith.constant dense<0.000000e+00> : vector<96x128xf32>
    %13 = tpu.matmul %12, %3, %cst {dimension_numbers = #tpu.dot_dimension_numbers<[1], [0], [0], [1], [0, 0, 1, 1], [], []>} : vector<96x27xbf16>, vector<27x128xbf16>, vector<96x128xf32> -> vector<96x128xf32>
    %14 = vector.broadcast %4 : vector<1x128xf32> to vector<96x128xf32>
    %15 = arith.addf %13, %14 : vector<96x128xf32>
    %16 = arith.negf %15 : vector<96x128xf32>
    %17 = math.exp %16 : vector<96x128xf32>
    %cst_7 = arith.constant 1.000000e+00 : f32
    %18 = vector.broadcast %cst_7 : f32 to vector<96x128xf32>
    %19 = arith.addf %18, %17 : vector<96x128xf32>
    %20 = arith.divf %18, %19 : vector<96x128xf32>
    %21 = arith.mulf %15, %20 : vector<96x128xf32>
    %cst_8 = arith.constant 0.000000e+00 : f32
    %22 = vector.shape_cast %10 : vector<96x1xi1> to vector<96x1xi1>
    %23 = vector.broadcast %22 : vector<96x1xi1> to vector<96x128xi1>
    %24 = vector.broadcast %cst_8 : f32 to vector<96x128xf32>
    %25 = arith.select %23, %21, %24 : vector<96x128xi1>, vector<96x128xf32>
    %cst_9 = arith.constant dense<0.000000e+00> : vector<128xf32>
    %26 = vector.multi_reduction <add>, %25, %cst_9 [0] : vector<96x128xf32> to vector<128xf32>
    %27 = vector.shape_cast %26 : vector<128xf32> to vector<1x128xf32>
    %c1 = arith.constant 1 : index
    %c0_10 = arith.constant 0 : index
    %c0_11 = arith.constant 0 : index
    %28 = vector.load %arg2[%c1, %c0_10, %c0_11] : memref<2x96x27xbf16, #tpu.memory_space<vmem>>, vector<1x96x27xbf16>
    %29 = vector.shape_cast %28 : vector<1x96x27xbf16> to vector<96x27xbf16>
    %cst_12 = arith.constant dense<0.000000e+00> : vector<96x128xf32>
    %30 = tpu.matmul %29, %3, %cst_12 {dimension_numbers = #tpu.dot_dimension_numbers<[1], [0], [0], [1], [0, 0, 1, 1], [], []>} : vector<96x27xbf16>, vector<27x128xbf16>, vector<96x128xf32> -> vector<96x128xf32>
    %31 = vector.broadcast %4 : vector<1x128xf32> to vector<96x128xf32>
    %32 = arith.addf %30, %31 : vector<96x128xf32>
    %33 = arith.negf %32 : vector<96x128xf32>
    %34 = math.exp %33 : vector<96x128xf32>
    %cst_13 = arith.constant 1.000000e+00 : f32
    %35 = vector.broadcast %cst_13 : f32 to vector<96x128xf32>
    %36 = arith.addf %35, %34 : vector<96x128xf32>
    %37 = arith.divf %35, %36 : vector<96x128xf32>
    %38 = arith.mulf %32, %37 : vector<96x128xf32>
    %cst_14 = arith.constant 0.000000e+00 : f32
    %39 = vector.shape_cast %10 : vector<96x1xi1> to vector<96x1xi1>
    %40 = vector.broadcast %39 : vector<96x1xi1> to vector<96x128xi1>
    %41 = vector.broadcast %cst_14 : f32 to vector<96x128xf32>
    %42 = arith.select %40, %38, %41 : vector<96x128xi1>, vector<96x128xf32>
    %cst_15 = arith.constant dense<0.000000e+00> : vector<128xf32>
    %43 = vector.multi_reduction <add>, %42, %cst_15 [0] : vector<96x128xf32> to vector<128xf32>
    %44 = vector.shape_cast %43 : vector<128xf32> to vector<1x128xf32>
    %45 = tpu.concatenate %27, %44 in 0 : vector<1x128xf32>, vector<1x128xf32> -> vector<2x128xf32>
    %c0_16 = arith.constant 0 : index
    %c0_17 = arith.constant 0 : index
    %46 = vector.load %arg8[%c0_16, %c0_17] : memref<2x128xf32, #tpu.memory_space<vmem>>, vector<2x128xf32>
    %47 = arith.addf %46, %45 : vector<2x128xf32>
    %c0_18 = arith.constant 0 : index
    %c0_19 = arith.constant 0 : index
    %48 = vector.load %arg8[%c0_18, %c0_19] : memref<2x128xf32, #tpu.memory_space<vmem>>, vector<2x128xf32>
    tpu.vector_store %arg8[%c0_18, %c0_19], %47 {strides = array<i32>} : memref<2x128xf32, #tpu.memory_space<vmem>>, vector<2x128xf32>,
    %c2_i32 = arith.constant 2 : i32
    %49 = arith.cmpi eq, %arg1, %c2_i32 : i32
    %50 = arith.extui %49 : i1 to i32
    %c0_i32_20 = arith.constant 0 : i32
    %51 = arith.cmpi ne, %50, %c0_i32_20 : i32
    scf.if %51 {
      %c0_21 = arith.constant 0 : index
      %c0_22 = arith.constant 0 : index
      %52 = vector.load %arg8[%c0_21, %c0_22] : memref<2x128xf32, #tpu.memory_space<vmem>>, vector<2x128xf32>
      %c0_23 = arith.constant 0 : index
      %c0_24 = arith.constant 0 : index
      %53 = vector.load %arg5[%c0_23, %c0_24] : memref<128x384xf32, #tpu.memory_space<vmem>>, vector<128x384xf32>
      %cst_25 = arith.constant dense<0.000000e+00> : vector<2x384xf32>
      %54 = tpu.matmul %52, %53, %cst_25 {dimension_numbers = #tpu.dot_dimension_numbers<[1], [0], [0], [1], [0, 0, 1, 1], [], []>} : vector<2x128xf32>, vector<128x384xf32>, vector<2x384xf32> -> vector<2x384xf32>
      %c0_26 = arith.constant 0 : index
      %c0_27 = arith.constant 0 : index
      %55 = vector.load %arg6[%c0_26, %c0_27] : memref<1x384xf32, #tpu.memory_space<vmem>>, vector<1x384xf32>
      %56 = vector.broadcast %55 : vector<1x384xf32> to vector<2x384xf32>
      %57 = arith.addf %54, %56 : vector<2x384xf32>
      %58 = vector.shape_cast %57 : vector<2x384xf32> to vector<2x1x384xf32>
      %c0_28 = arith.constant 0 : index
      %c0_29 = arith.constant 0 : index
      %c0_30 = arith.constant 0 : index
      %59 = vector.load %arg7[%c0_28, %c0_29, %c0_30] : memref<2x1x384xf32, #tpu.memory_space<vmem>>, vector<2x1x384xf32>
      tpu.vector_store %arg7[%c0_28, %c0_29, %c0_30], %58 {strides = array<i32>} : memref<2x1x384xf32, #tpu.memory_space<vmem>>, vector<2x1x384xf32>,
    } else {
    }
    return
  }
  func.func @transform_0(%arg0: i32, %arg1: i32) -> (i32, i32, i32) {
    %c0_i32 = arith.constant 0 : i32
    %c0_i32_0 = arith.constant 0 : i32
    return %arg0, %arg1, %c0_i32 : i32, i32, i32
  }
  func.func @transform_1(%arg0: i32, %arg1: i32) -> (i32, i32) {
    %c0_i32 = arith.constant 0 : i32
    %c0_i32_0 = arith.constant 0 : i32
    %c0_i32_1 = arith.constant 0 : i32
    return %c0_i32, %c0_i32_0 : i32, i32
  }
  func.func @transform_2(%arg0: i32, %arg1: i32) -> (i32, i32) {
    %c0_i32 = arith.constant 0 : i32
    %c0_i32_0 = arith.constant 0 : i32
    %c0_i32_1 = arith.constant 0 : i32
    return %c0_i32, %c0_i32_0 : i32, i32
  }
  func.func @transform_3(%arg0: i32, %arg1: i32) -> (i32, i32) {
    %c0_i32 = arith.constant 0 : i32
    %c0_i32_0 = arith.constant 0 : i32
    %c0_i32_1 = arith.constant 0 : i32
    return %c0_i32, %c0_i32_0 : i32, i32
  }
  func.func @transform_4(%arg0: i32, %arg1: i32) -> (i32, i32) {
    %c0_i32 = arith.constant 0 : i32
    %c0_i32_0 = arith.constant 0 : i32
    %c0_i32_1 = arith.constant 0 : i32
    return %c0_i32, %c0_i32_0 : i32, i32
  }
  func.func @transform_5(%arg0: i32, %arg1: i32) -> (i32, i32, i32) {
    %c0_i32 = arith.constant 0 : i32
    %c0_i32_0 = arith.constant 0 : i32
    %c0_i32_1 = arith.constant 0 : i32
    return %arg0, %c0_i32, %c0_i32_0 : i32, i32, i32
  }
}

</mosaic_0001>

<llo_original>
// kernel: tpu_custom_call.1
$region0: #{tpu_custom_call.1}
  #allocation0 [shape = 'u32[]', space=smem, size = 0x4, offset = 0x4, fixed_abs, tag = 'smem constant byte address 0x4 - core index']
  #allocation1 [shape = 'u32[144,128]{1,0:T(1,128)}', space=vmem, size = 0x12000, scoped, tag = 'internal scratch']
  #allocation2 [shape = 'f32[2,128]{1,0:T(2,128)}', space=vmem, size = 0x400, scoped, tag = 'scratch operand']
  %s0 = inlined_call_operand.vmem [shape: bf16[2,288,27], index: 0, kind: input, shape index: {}]
  %s1 = inlined_call_operand.vmem [shape: bf16[27,128], index: 1, kind: input, shape index: {}]
  %s2 = inlined_call_operand.vmem [shape: f32[1,128], index: 2, kind: input, shape index: {}]
  %s3 = inlined_call_operand.hbm [shape: f32[128,384], index: 3, kind: input, shape index: {}]
  %s4 = inlined_call_operand.vmem [shape: f32[1,384], index: 4, kind: input, shape index: {}]
  %s5 = inlined_call_operand.hbm [shape: f32[2,1,384], index: 5, kind: output, shape index: {}]
  %s6 = sld [smem:[#allocation0]]
  $region106: #{tpu_custom_call.1} parent=0
    _
  %s8 = ssub.s32 1, %s6
  %s9 = scalar_select 0, %s8, %s6
  $region1: #{tpu_custom_call.1} parent=0
    #allocation3 [shape = 'u8[98304]{0}', space=vmem, size = 0x18000, scoped, tag = 'input window, operand 0']
    #allocation4 [shape = 'u8[196608]{0}', space=vmem, size = 0x30000, scoped, tag = 'input window, operand 3, single buffered']
    #allocation5 [shape = 's32[2]{0}', space=sflag, size = 0x8, scoped, tag = 'scoped memory for tpu_custom_call.1']
    #allocation6 [shape = 's32[2]{0}', space=sflag, size = 0x8, scoped, tag = 'scoped memory for tpu_custom_call.1']
    #allocation7 [shape = 'u8[3072]{0}', space=vmem, size = 0xc00, scoped, tag = 'output window, operand 0, single buffered']
    %10 = vsyncpa [#allocation5], 0
    %11 = vsyncpa [#allocation6], 0
    loop: start=0, step=1, limit=5
    $region2: #{tpu_custom_call.1} parent=1 // loop_pre_header
      _
    $region3: #{tpu_custom_call.1} parent=1 // loop_header
      %s13 = sphi 0, %s17
      %p14 = scmp.ge.s32.totalorder %s13, 5
      %s20 = sphi 0, %s32
      %s21 = sphi 0, %s28
      %s22 = sphi 0, %s20
      %s23 = sphi 0, %s21
      %s24 = sphi 0, %s22
      %s25 = sphi 0, %s23
      %s37 = sphi 0, %s39
      %s40 = sphi 0, %s37
      %s41 = sphi 0, %s40
      %s57 = sphi 0, %s41
      %s61 = sphi 0, %s61
      %s63 = sphi 0, %s61
      %s64 = sphi 0, %s63
      %s78 = sphi 0, %s64
      %s82 = sphi 0, %s82
      %s84 = sphi 0, %s82
      %s85 = sphi 0, %s84
      %s99 = sphi 0, %s85
      %s103 = sphi 0, %s103
      %s105 = sphi 0, %s103
      %s106 = sphi 0, %s105
      %s120 = sphi 0, %s106
      %s124 = sphi 0, %s124
      %s126 = sphi 0, %s124
      %s127 = sphi 0, %s126
      %s141 = sphi 0, %s127
      %s147 = sphi 0, %s149
      %s150 = sphi 0, %s147
      %s151 = sphi 0, %s150
      %s167 = sphi 0, %s151
    $region4: #{tpu_custom_call.1} parent=1 // loop_header_branch
      %16 = sbr.rel (%p14) target = $region8
    $region5: #{tpu_custom_call.1} parent=1 // loop_body
      %s18 = ssub.s32 %s13, 1
      %s19 = ssub.s32 %s13, 2
      %s26 = sadd.s32 1, %s21
      %p27 = scmp.ge.s32.totalorder %s26, 3
      %s28 = scalar_select %p27, 0, %s26
      %s29 = sadd.s32 1, %s20
      %s30 = scalar_select %p27, %s29, %s20
      %p31 = scmp.ge.s32.totalorder %s30, 1
      %s32 = scalar_select %p31, 0, %s30
      %s33 = ssub.s32 %s20, %s32
      %s34 = ssub.s32 %s21, %s28
      %s35 = sor.u32 %s33, %s34
      %p36 = scmp.eq.s32.totalorder %s35, 0
      %s38 = sadd.s32 %s37, 1
      %s39 = scalar_select %p36, %s37, %s38
      %p42 = pneg %p36
      %p43 = scmp.eq.s32.totalorder %s13, 2
      %p44 = por %p42, %p43
      %p45 = scmp.ne.s32.totalorder %s37, %s40
      %p46 = scmp.eq.s32.totalorder %s13, 0
      %p47 = por %p45, %p46
      %p48 = scmp.ne.s32.totalorder %s37, %s40
      %p49 = scmp.eq.s32.totalorder %s18, 2
      %p50 = por %p48, %p49
      %p51 = scmp.ne.s32.totalorder %s40, %s41
      %p52 = scmp.eq.s32.totalorder %s18, 0
      %p53 = por %p51, %p52
      %p54 = scmp.ne.s32.totalorder %s40, %s41
      %p55 = scmp.eq.s32.totalorder %s19, 2
      %p56 = por %p54, %p55
      %p58 = scmp.ne.s32.totalorder %s41, %s57
      %p59 = scmp.eq.s32.totalorder %s19, 0
      %p60 = por %p58, %p59
      %s62 = sadd.s32 %s61, 1
      %p65 = scmp.eq.s32.totalorder %s13, 2
      %p66 = scmp.ne.s32.totalorder %s61, %s63
      %p67 = scmp.eq.s32.totalorder %s13, 0
      %p68 = por %p66, %p67
      %p69 = scmp.ne.s32.totalorder %s61, %s63
      %p70 = scmp.eq.s32.totalorder %s18, 2
      %p71 = por %p69, %p70
      %p72 = scmp.ne.s32.totalorder %s63, %s64
      %p73 = scmp.eq.s32.totalorder %s18, 0
      %p74 = por %p72, %p73
      %p75 = scmp.ne.s32.totalorder %s63, %s64
      %p76 = scmp.eq.s32.totalorder %s19, 2
      %p77 = por %p75, %p76
      %p79 = scmp.ne.s32.totalorder %s64, %s78
      %p80 = scmp.eq.s32.totalorder %s19, 0
      %p81 = por %p79, %p80
      %s83 = sadd.s32 %s82, 1
      %p86 = scmp.eq.s32.totalorder %s13, 2
      %p87 = scmp.ne.s32.totalorder %s82, %s84
      %p88 = scmp.eq.s32.totalorder %s13, 0
      %p89 = por %p87, %p88
      %p90 = scmp.ne.s32.totalorder %s82, %s84
      %p91 = scmp.eq.s32.totalorder %s18, 2
      %p92 = por %p90, %p91
      %p93 = scmp.ne.s32.totalorder %s84, %s85
      %p94 = scmp.eq.s32.totalorder %s18, 0
      %p95 = por %p93, %p94
      %p96 = scmp.ne.s32.totalorder %s84, %s85
      %p97 = scmp.eq.s32.totalorder %s19, 2
      %p98 = por %p96, %p97
      %p100 = scmp.ne.s32.totalorder %s85, %s99
      %p101 = scmp.eq.s32.totalorder %s19, 0
      %p102 = por %p100, %p101
      %s104 = sadd.s32 %s103, 1
      %p107 = scmp.eq.s32.totalorder %s13, 2
      %p108 = scmp.ne.s32.totalorder %s103, %s105
      %p109 = scmp.eq.s32.totalorder %s13, 0
      %p110 = por %p108, %p109
      %p111 = scmp.ne.s32.totalorder %s103, %s105
      %p112 = scmp.eq.s32.totalorder %s18, 2
      %p113 = por %p111, %p112
      %p114 = scmp.ne.s32.totalorder %s105, %s106
      %p115 = scmp.eq.s32.totalorder %s18, 0
      %p116 = por %p114, %p115
      %p117 = scmp.ne.s32.totalorder %s105, %s106
      %p118 = scmp.eq.s32.totalorder %s19, 2
      %p119 = por %p117, %p118
      %p121 = scmp.ne.s32.totalorder %s106, %s120
      %p122 = scmp.eq.s32.totalorder %s19, 0
      %p123 = por %p121, %p122
      %s125 = sadd.s32 %s124, 1
      %p128 = scmp.eq.s32.totalorder %s13, 2
      %p129 = scmp.ne.s32.totalorder %s124, %s126
      %p130 = scmp.eq.s32.totalorder %s13, 0
      %p131 = por %p129, %p130
      %p132 = scmp.ne.s32.totalorder %s124, %s126
      %p133 = scmp.eq.s32.totalorder %s18, 2
      %p134 = por %p132, %p133
      %p135 = scmp.ne.s32.totalorder %s126, %s127
      %p136 = scmp.eq.s32.totalorder %s18, 0
      %p137 = por %p135, %p136
      %p138 = scmp.ne.s32.totalorder %s126, %s127
      %p139 = scmp.eq.s32.totalorder %s19, 2
      %p140 = por %p138, %p139
      %p142 = scmp.ne.s32.totalorder %s127, %s141
      %p143 = scmp.eq.s32.totalorder %s19, 0
      %p144 = por %p142, %p143
      %s145 = ssub.s32 %s20, %s32
      %p146 = scmp.eq.s32.totalorder %s145, 0
      %s148 = sadd.s32 %s147, 1
      %s149 = scalar_select %p146, %s147, %s148
      %p152 = pneg %p146
      %p153 = scmp.eq.s32.totalorder %s13, 2
      %p154 = por %p152, %p153
      %p155 = scmp.ne.s32.totalorder %s147, %s150
      %p156 = scmp.eq.s32.totalorder %s13, 0
      %p157 = por %p155, %p156
      %p158 = scmp.ne.s32.totalorder %s147, %s150
      %p159 = scmp.eq.s32.totalorder %s18, 2
      %p160 = por %p158, %p159
      %p161 = scmp.ne.s32.totalorder %s150, %s151
      %p162 = scmp.eq.s32.totalorder %s18, 0
      %p163 = por %p161, %p162
      %p164 = scmp.ne.s32.totalorder %s150, %s151
      %p165 = scmp.eq.s32.totalorder %s19, 2
      %p166 = por %p164, %p165
      %p168 = scmp.ne.s32.totalorder %s151, %s167
      %p169 = scmp.eq.s32.totalorder %s19, 0
      %p170 = por %p168, %p169
      %p171 = scmp.le.s32.totalorder 1, %s13
      %p172 = scmp.lt.s32.totalorder %s13, 4
      %p173 = pnand %p171, %p172
      %p174 = pneg %p173
      // Predicated region
      $region9: #{tpu_custom_call.1} parent=5 // pred_check
        _
      $region10: #{tpu_custom_call.1} parent=5 // pred_check_branch
        %176 = sbr.rel (%p173) target = $region12
      $region11: #{tpu_custom_call.1} parent=5 // pred_region
        %s177 = ssub.s32 %s13, 1
        // Predicated region
        $region13: #{tpu_custom_call.1} parent=11 // pred_check
          %p178 = pneg %p74
        $region14: #{tpu_custom_call.1} parent=11 // pred_check_branch
          %180 = sbr.rel (%p178) target = $region16
        $region15: #{tpu_custom_call.1} parent=11 // pred_region
          _
        $region16: #{tpu_custom_call.1} parent=11 // pred_fallthru
          _
        // Predicated region
        $region17: #{tpu_custom_call.1} parent=11 // pred_check
          %p181 = pneg %p95
        $region18: #{tpu_custom_call.1} parent=11 // pred_check_branch
          %183 = sbr.rel (%p181) target = $region20
        $region19: #{tpu_custom_call.1} parent=11 // pred_region
          _
        $region20: #{tpu_custom_call.1} parent=11 // pred_fallthru
          _
        // Predicated region
        $region21: #{tpu_custom_call.1} parent=11 // pred_check
          %p184 = pneg %p116
        $region22: #{tpu_custom_call.1} parent=11 // pred_check_branch
          %186 = sbr.rel (%p184) target = $region24
        $region23: #{tpu_custom_call.1} parent=11 // pred_region
          %s188 = ssub.s32 6144, 6144
          %189 = vsyncadd [#allocation5], %s188
          %s190 = sshll.u32 [#allocation4], 4
          %s191 = int_to_ptr.vmem [resolvable:$true] %s190
          %196 = dma.hbm_to_vmem [thread:$0]  %s3, 6144, %s191, [#allocation5], 384, 384, 24
        $region24: #{tpu_custom_call.1} parent=11 // pred_fallthru
          _
        // Predicated region
        $region25: #{tpu_custom_call.1} parent=11 // pred_check
          %p197 = pneg %p137
        $region26: #{tpu_custom_call.1} parent=11 // pred_check_branch
          %199 = sbr.rel (%p197) target = $region28
        $region27: #{tpu_custom_call.1} parent=11 // pred_region
          _
        $region28: #{tpu_custom_call.1} parent=11 // pred_fallthru
          _
      $region12: #{tpu_custom_call.1} parent=5 // pred_fallthru
        _
      %p200 = scmp.lt.s32.totalorder %s13, 3
      // Predicated region
      $region29: #{tpu_custom_call.1} parent=5 // pred_check
        %p201 = pneg %p200
      $region30: #{tpu_custom_call.1} parent=5 // pred_check_branch
        %203 = sbr.rel (%p201) target = $region32
      $region31: #{tpu_custom_call.1} parent=5 // pred_region
        // Predicated region
        $region33: #{tpu_custom_call.1} parent=31 // pred_check
          %p204 = pneg %p47
        $region34: #{tpu_custom_call.1} parent=31 // pred_check_branch
          %206 = sbr.rel (%p204) target = $region36
        $region35: #{tpu_custom_call.1} parent=31 // pred_region
          %s207 = sand.u32 %s37, 1
          %s208 = sand.u32 %s37, 1
          %s209 = smul.addr %s208, 96
          %s210 = scalar_lea.vmem [#allocation3], %s209
          %s211 = smul.u32 2, %s20
          %s212 = smul.u32 12, %s21
          %s213 = smul.addr %s211, 36
          %s214 = sadd.s32 %s212, %s213
          %s215 = smul.addr %s214, 4
          %s216 = scalar_lea.vmem %s0, %s215
          // Predicated region
          $region37: #{tpu_custom_call.1} parent=35 // pred_check
            _
          $region38: #{tpu_custom_call.1} parent=35 // pred_check_branch
            %218 = sbr.rel (0) target = $region40
          $region39: #{tpu_custom_call.1} parent=35 // pred_region
            // Predicated region
            $region41: #{tpu_custom_call.1} parent=39 // pred_check
              _
            $region42: #{tpu_custom_call.1} parent=39 // pred_check_branch
              %220 = sbr.rel target = $region44
            $region43: #{tpu_custom_call.1} parent=39 // pred_region
              // Predicated region
              $region56: #{tpu_custom_call.1} parent=43 // pred_check
                _
              $region57: #{tpu_custom_call.1} parent=43 // pred_check_branch
                %282 = sbr.rel (0) target = $region59
              $region58: #{tpu_custom_call.1} parent=43 // pred_region
                loop: start=0, step=1, limit=1
                $region60: #{tpu_custom_call.1} parent=58 // loop_pre_header
                  _
                $region61: #{tpu_custom_call.1} parent=58 // loop_header
                  %s284 = sphi 0, %s288
                  %p285 = scmp.ge.s32.totalorder %s284, 1
                  %s289 = sphi %s216, %s216
                  %s290 = sphi %s210, %s210
                $region62: #{tpu_custom_call.1} parent=58 // loop_header_branch
                  %287 = sbr.rel (%p285) target = $region66
                $region63: #{tpu_custom_call.1} parent=58 // loop_body
                  _
                $region64: #{tpu_custom_call.1} parent=58 // loop_footer
                  %s288 = sadd.s32 1, %s284
                $region65: #{tpu_custom_call.1} parent=58 // loop_footer_branch
                  %283 = sbr.rel target = $region61
                $region66: #{tpu_custom_call.1} parent=58 // loop_exit
                  _
                %s292 = ssub.s32 16, 1
                loop: start=0, step=1, limit=1
                $region67: #{tpu_custom_call.1} parent=58 // loop_pre_header
                  _
                $region68: #{tpu_custom_call.1} parent=58 // loop_header
                  %s294 = sphi 0, %s298
                  %p295 = scmp.ge.s32.totalorder %s294, 1
                  %s299 = sphi %s216, %s216
                  %s300 = sphi %s210, %s210
                $region69: #{tpu_custom_call.1} parent=58 // loop_header_branch
                  %297 = sbr.rel (%p295) target = $region73
                $region70: #{tpu_custom_call.1} parent=58 // loop_body
                  %v301 = vld [vmem:[%s299] sm:%s292]
                  %302 = vst [vmem:[%s300] sm:%s292] %v301
                  %v303 = vld [vmem:[%s299 + $0x4] sm:%s292]
                  %304 = vst [vmem:[%s300 + $0x4] sm:%s292] %v303
                  %v305 = vld [vmem:[%s299 + $0x8] sm:%s292]
                  %306 = vst [vmem:[%s300 + $0x8] sm:%s292] %v305
                  %v307 = vld [vmem:[%s299 + $0xc] sm:%s292]
                  %308 = vst [vmem:[%s300 + $0xc] sm:%s292] %v307
                  %v309 = vld [vmem:[%s299 + $0x10] sm:%s292]
                  %310 = vst [vmem:[%s300 + $0x10] sm:%s292] %v309
                  %v311 = vld [vmem:[%s299 + $0x14] sm:%s292]
                  %312 = vst [vmem:[%s300 + $0x14] sm:%s292] %v311
                  %v313 = vld [vmem:[%s299 + $0x18] sm:%s292]
                  %314 = vst [vmem:[%s300 + $0x18] sm:%s292] %v313
                  %v315 = vld [vmem:[%s299 + $0x1c] sm:%s292]
                  %316 = vst [vmem:[%s300 + $0x1c] sm:%s292] %v315
                  %v317 = vld [vmem:[%s299 + $0x20] sm:%s292]
                  %318 = vst [vmem:[%s300 + $0x20] sm:%s292] %v317
                  %v319 = vld [vmem:[%s299 + $0x24] sm:%s292]
                  %320 = vst [vmem:[%s300 + $0x24] sm:%s292] %v319
                  %v321 = vld [vmem:[%s299 + $0x28] sm:%s292]
                  %322 = vst [vmem:[%s300 + $0x28] sm:%s292] %v321
                  %v323 = vld [vmem:[%s299 + $0x2c] sm:%s292]
                  %324 = vst [vmem:[%s300 + $0x2c] sm:%s292] %v323
                  %v325 = vld [vmem:[%s299 + $0x90] sm:%s292]
                  %326 = vst [vmem:[%s300 + $0x30] sm:%s292] %v325
                  %v327 = vld [vmem:[%s299 + $0x94] sm:%s292]
                  %328 = vst [vmem:[%s300 + $0x34] sm:%s292] %v327
                  %v329 = vld [vmem:[%s299 + $0x98] sm:%s292]
                  %330 = vst [vmem:[%s300 + $0x38] sm:%s292] %v329
                  %v331 = vld [vmem:[%s299 + $0x9c] sm:%s292]
                  %332 = vst [vmem:[%s300 + $0x3c] sm:%s292] %v331
                  %v333 = vld [vmem:[%s299 + $0xa0] sm:%s292]
                  %334 = vst [vmem:[%s300 + $0x40] sm:%s292] %v333
                  %v335 = vld [vmem:[%s299 + $0xa4] sm:%s292]
                  %336 = vst [vmem:[%s300 + $0x44] sm:%s292] %v335
                  %v337 = vld [vmem:[%s299 + $0xa8] sm:%s292]
                  %338 = vst [vmem:[%s300 + $0x48] sm:%s292] %v337
                  %v339 = vld [vmem:[%s299 + $0xac] sm:%s292]
                  %340 = vst [vmem:[%s300 + $0x4c] sm:%s292] %v339
                  %v341 = vld [vmem:[%s299 + $0xb0] sm:%s292]
                  %342 = vst [vmem:[%s300 + $0x50] sm:%s292] %v341
                  %v343 = vld [vmem:[%s299 + $0xb4] sm:%s292]
                  %344 = vst [vmem:[%s300 + $0x54] sm:%s292] %v343
                  %v345 = vld [vmem:[%s299 + $0xb8] sm:%s292]
                  %346 = vst [vmem:[%s300 + $0x58] sm:%s292] %v345
                  %v347 = vld [vmem:[%s299 + $0xbc] sm:%s292]
                  %348 = vst [vmem:[%s300 + $0x5c] sm:%s292] %v347
                $region71: #{tpu_custom_call.1} parent=58 // loop_footer
                  %s298 = sadd.s32 1, %s294
                $region72: #{tpu_custom_call.1} parent=58 // loop_footer_branch
                  %293 = sbr.rel target = $region68
                $region73: #{tpu_custom_call.1} parent=58 // loop_exit
                  _
              $region59: #{tpu_custom_call.1} parent=43 // pred_fallthru
                _
            $region44: #{tpu_custom_call.1} parent=39 // pred_fallthru
              _
            // Predicated region
            $region45: #{tpu_custom_call.1} parent=39 // pred_check
              _
            $region46: #{tpu_custom_call.1} parent=39 // pred_check_branch
              %222 = sbr.rel (0) target = $region48
            $region47: #{tpu_custom_call.1} parent=39 // pred_region
              %s224 = ssub.s32 16, 1
              loop: start=0, step=1, limit=1
              $region49: #{tpu_custom_call.1} parent=47 // loop_pre_header
                _
              $region50: #{tpu_custom_call.1} parent=47 // loop_header
                %s226 = sphi 0, %s230
                %p227 = scmp.ge.s32.totalorder %s226, 1
                %s231 = sphi %s216, %s216
                %s232 = sphi %s210, %s210
              $region51: #{tpu_custom_call.1} parent=47 // loop_header_branch
                %229 = sbr.rel (%p227) target = $region55
              $region52: #{tpu_custom_call.1} parent=47 // loop_body
                %v233 = vld [vmem:[%s231] sm:%s224]
                %234 = vst [vmem:[%s232] sm:%s224] %v233
                %v235 = vld [vmem:[%s231 + $0x4] sm:%s224]
                %236 = vst [vmem:[%s232 + $0x4] sm:%s224] %v235
                %v237 = vld [vmem:[%s231 + $0x8] sm:%s224]
                %238 = vst [vmem:[%s232 + $0x8] sm:%s224] %v237
                %v239 = vld [vmem:[%s231 + $0xc] sm:%s224]
                %240 = vst [vmem:[%s232 + $0xc] sm:%s224] %v239
                %v241 = vld [vmem:[%s231 + $0x10] sm:%s224]
                %242 = vst [vmem:[%s232 + $0x10] sm:%s224] %v241
                %v243 = vld [vmem:[%s231 + $0x14] sm:%s224]
                %244 = vst [vmem:[%s232 + $0x14] sm:%s224] %v243
                %v245 = vld [vmem:[%s231 + $0x18] sm:%s224]
                %246 = vst [vmem:[%s232 + $0x18] sm:%s224] %v245
                %v247 = vld [vmem:[%s231 + $0x1c] sm:%s224]
                %248 = vst [vmem:[%s232 + $0x1c] sm:%s224] %v247
                %v249 = vld [vmem:[%s231 + $0x20] sm:%s224]
                %250 = vst [vmem:[%s232 + $0x20] sm:%s224] %v249
                %v251 = vld [vmem:[%s231 + $0x24] sm:%s224]
                %252 = vst [vmem:[%s232 + $0x24] sm:%s224] %v251
                %v253 = vld [vmem:[%s231 + $0x28] sm:%s224]
                %254 = vst [vmem:[%s232 + $0x28] sm:%s224] %v253
                %v255 = vld [vmem:[%s231 + $0x2c] sm:%s224]
                %256 = vst [vmem:[%s232 + $0x2c] sm:%s224] %v255
                %v257 = vld [vmem:[%s231 + $0x90] sm:%s224]
                %258 = vst [vmem:[%s232 + $0x30] sm:%s224] %v257
                %v259 = vld [vmem:[%s231 + $0x94] sm:%s224]
                %260 = vst [vmem:[%s232 + $0x34] sm:%s224] %v259
                %v261 = vld [vmem:[%s231 + $0x98] sm:%s224]
                %262 = vst [vmem:[%s232 + $0x38] sm:%s224] %v261
                %v263 = vld [vmem:[%s231 + $0x9c] sm:%s224]
                %264 = vst [vmem:[%s232 + $0x3c] sm:%s224] %v263
                %v265 = vld [vmem:[%s231 + $0xa0] sm:%s224]
                %266 = vst [vmem:[%s232 + $0x40] sm:%s224] %v265
                %v267 = vld [vmem:[%s231 + $0xa4] sm:%s224]
                %268 = vst [vmem:[%s232 + $0x44] sm:%s224] %v267
                %v269 = vld [vmem:[%s231 + $0xa8] sm:%s224]
                %270 = vst [vmem:[%s232 + $0x48] sm:%s224] %v269
                %v271 = vld [vmem:[%s231 + $0xac] sm:%s224]
                %272 = vst [vmem:[%s232 + $0x4c] sm:%s224] %v271
                %v273 = vld [vmem:[%s231 + $0xb0] sm:%s224]
                %274 = vst [vmem:[%s232 + $0x50] sm:%s224] %v273
                %v275 = vld [vmem:[%s231 + $0xb4] sm:%s224]
                %276 = vst [vmem:[%s232 + $0x54] sm:%s224] %v275
                %v277 = vld [vmem:[%s231 + $0xb8] sm:%s224]
                %278 = vst [vmem:[%s232 + $0x58] sm:%s224] %v277
                %v279 = vld [vmem:[%s231 + $0xbc] sm:%s224]
                %280 = vst [vmem:[%s232 + $0x5c] sm:%s224] %v279
              $region53: #{tpu_custom_call.1} parent=47 // loop_footer
                %s230 = sadd.s32 1, %s226
              $region54: #{tpu_custom_call.1} parent=47 // loop_footer_branch
                %225 = sbr.rel target = $region50
              $region55: #{tpu_custom_call.1} parent=47 // loop_exit
                _
            $region48: #{tpu_custom_call.1} parent=39 // pred_fallthru
              _
          $region40: #{tpu_custom_call.1} parent=35 // pred_fallthru
            _
          %349 = vnop
        $region36: #{tpu_custom_call.1} parent=31 // pred_fallthru
          _
      $region32: #{tpu_custom_call.1} parent=5 // pred_fallthru
        _
      %p350 = scmp.le.s32.totalorder 1, %s13
      %p351 = scmp.lt.s32.totalorder %s13, 4
      %p352 = pnand %p350, %p351
      %p353 = pneg %p352
      // Predicated region
      $region74: #{tpu_custom_call.1} parent=5 // pred_check
        _
      $region75: #{tpu_custom_call.1} parent=5 // pred_check_branch
        %355 = sbr.rel (%p352) target = $region77
      $region76: #{tpu_custom_call.1} parent=5 // pred_region
        %s356 = ssub.s32 %s13, 1
        %s357 = sand.u32 %s40, 1
        %s358 = sand.u32 %s40, 1
        %s359 = smul.addr %s358, 96
        %s360 = scalar_lea.vmem [#allocation3], %s359
        // Predicated region
        $region78: #{tpu_custom_call.1} parent=76 // pred_check
          %p361 = pneg %p53
        $region79: #{tpu_custom_call.1} parent=76 // pred_check_branch
          %363 = sbr.rel (%p361) target = $region81
        $region80: #{tpu_custom_call.1} parent=76 // pred_region
          _
        $region81: #{tpu_custom_call.1} parent=76 // pred_fallthru
          _
        // Predicated region
        $region82: #{tpu_custom_call.1} parent=76 // pred_check
          %p364 = pneg %p116
        $region83: #{tpu_custom_call.1} parent=76 // pred_check_branch
          %366 = sbr.rel (%p364) target = $region85
        $region84: #{tpu_custom_call.1} parent=76 // pred_region
          %367 = dma.done [#allocation5], 6144
        $region85: #{tpu_custom_call.1} parent=76 // pred_fallthru
          _
        %s368 = sand.u32 %s40, 1
        %s369 = sand.u32 %s40, 1
        %s370 = smul.addr %s369, 96
        %s371 = scalar_lea.vmem [#allocation3], %s370
        %p372 = pneg %p53
        %p373 = pneg %p50
        %p374 = pneg %p74
        %p375 = pneg %p71
        %p376 = pneg %p95
        %p377 = pneg %p92
        %p378 = pneg %p116
        %p379 = pneg %p113
        %p380 = pneg %p137
        %p381 = pneg %p134
        %p382 = pneg %p163
        %p383 = pneg %p160
        %s384 = smul.u32 2, %s22
        %s385 = smul.u32 12, %s23
        %s386 = smul.u32 2, %s22
        %p388 = scmp.eq.s32.totalorder %s23, 0
        // Predicated region
        $region86: #{tpu_custom_call.1} parent=76 // pred_check
          %p389 = pneg %p388
        $region87: #{tpu_custom_call.1} parent=76 // pred_check_branch
          %391 = sbr.rel (%p389) target = $region89
        $region88: #{tpu_custom_call.1} parent=76 // pred_region
          %392 = vst [vmem:[#allocation2] sm:$0x3] 0.0
        $region89: #{tpu_custom_call.1} parent=76 // pred_fallthru
          _
        %v393 = vld [vmem:[%s1] sm:$0xf]
        %v394 = vld [vmem:[%s1 + $0x4] sm:$0xf]
        %v395 = vld [vmem:[%s1 + $0x8] sm:$0xf]
        %v396 = vld [vmem:[%s1 + $0xc] sm:$0x3]
        %v397 = vld [vmem:[%s2] sm:$0x1]
        %s398 = smul.u32 %s23, 96
        %v399 = vlaneseq
        %v400 = vshrl.u32 %v399, 7
        %v401 = vadd.s32 %v400, 8
        %v402 = vadd.s32 %v400, 16
        %v403 = vadd.s32 %v400, 24
        %v404 = vadd.s32 %v400, 32
        %v405 = vadd.s32 %v400, 40
        %v406 = vadd.s32 %v400, 48
        %v407 = vadd.s32 %v400, 56
        %v408 = vadd.s32 %v400, 64
        %v409 = vadd.s32 %v400, 72
        %v410 = vadd.s32 %v400, 80
        %v411 = vadd.s32 %v400, 88
        %v412 = vstv %s398
        %v413 = vadd.s32 %v412, %v400
        %v414 = vadd.s32 %v412, %v401
        %v415 = vadd.s32 %v412, %v402
        %v416 = vadd.s32 %v412, %v403
        %v417 = vadd.s32 %v412, %v404
        %v418 = vadd.s32 %v412, %v405
        %v419 = vadd.s32 %v412, %v406
        %v420 = vadd.s32 %v412, %v407
        %v421 = vadd.s32 %v412, %v408
        %v422 = vadd.s32 %v412, %v409
        %v423 = vadd.s32 %v412, %v410
        %v424 = vadd.s32 %v412, %v411
        %vm425 = vcmp.lt.s32.totalorder %v413, 256
        %vm426 = vcmp.lt.s32.totalorder %v414, 256
        %vm427 = vcmp.lt.s32.totalorder %v415, 256
        %vm428 = vcmp.lt.s32.totalorder %v416, 256
        %vm429 = vcmp.lt.s32.totalorder %v417, 256
        %vm430 = vcmp.lt.s32.totalorder %v418, 256
        %vm431 = vcmp.lt.s32.totalorder %v419, 256
        %vm432 = vcmp.lt.s32.totalorder %v420, 256
        %vm433 = vcmp.lt.s32.totalorder %v421, 256
        %vm434 = vcmp.lt.s32.totalorder %v422, 256
        %vm435 = vcmp.lt.s32.totalorder %v423, 256
        %vm436 = vcmp.lt.s32.totalorder %v424, 256
        %v437 = vld [vmem:[%s360] sm:$0xf]
        %v438 = vld [vmem:[%s360 + $0x4] sm:$0xf]
        %v439 = vld [vmem:[%s360 + $0x8] sm:$0xf]
        %v440 = vld [vmem:[%s360 + $0xc] sm:$0xf]
        %v441 = vld [vmem:[%s360 + $0x10] sm:$0xf]
        %v442 = vld [vmem:[%s360 + $0x14] sm:$0xf]
        %v443 = vld [vmem:[%s360 + $0x18] sm:$0xf]
        %v444 = vld [vmem:[%s360 + $0x1c] sm:$0xf]
        %v445 = vld [vmem:[%s360 + $0x20] sm:$0xf]
        %v446 = vld [vmem:[%s360 + $0x24] sm:$0xf]
        %v447 = vld [vmem:[%s360 + $0x28] sm:$0xf]
        %v448 = vld [vmem:[%s360 + $0x2c] sm:$0xf]
        %v450 = vlaneseq
        %v451 = vshrl.u32 %v450, 7
        %v452 = vsub.s32 0, %v451
        %v453 = vrot.slane %v397, %v452
        %v467 = vunpack.c.l.b16 %v437
        %v468 = vunpack.c.l.b16 %v438
        %v469 = vunpack.c.l.b16 %v439
        %v470 = vunpack.c.l.b16 %v440
        %v471 = vunpack.c.l.b16 %v441
        %v472 = vunpack.c.l.b16 %v442
        %v473 = vunpack.c.l.b16 %v443
        %v474 = vunpack.c.l.b16 %v444
        %v475 = vunpack.c.l.b16 %v445
        %v476 = vunpack.c.l.b16 %v446
        %v477 = vunpack.c.l.b16 %v447
        %v478 = vunpack.c.l.b16 %v448
        %v479 = vpack.c.b16 %v468, %v467
        %v480 = vpack.c.b16 %v470, %v469
        %v481 = vpack.c.b16 %v472, %v471
        %v482 = vpack.c.b16 %v474, %v473
        %v483 = vpack.c.b16 %v476, %v475
        %v484 = vpack.c.b16 %v478, %v477
        %v489 = vunpack.c.l.b16 %v393
        %v490 = vunpack.c.l.b16 %v394
        %v491 = vunpack.c.l.b16 %v395
        %v492 = vunpack.c.l.b16 %v396
        %v493 = vpack.c.b16 %v490, %v489
        %v494 = vpack.c.b16 %v492, %v491
        %vm496 = vcmask 220160
        %v498 = vsel %vm496, %v479, 0
        %v501 = vsel %vm496, %v480, 0
        %v504 = vsel %vm496, %v481, 0
        %v507 = vsel %vm496, %v482, 0
        %v510 = vsel %vm496, %v483, 0
        %v513 = vsel %vm496, %v484, 0
        %vm515 = vcmask 1044480
        %vm516 = vcmask 1045504
        %v517 = vsel %vm515, 4294967295, 65535
        %v518 = vsel %vm516, %v517, 0
        %v520 = vand.u32 %v494, %v518
        %522 = vmatprep.subr.bf16.mxu0 0
        %523 = vmatpush1.bf16.msra.mxu0 0
        %524 = vmatprep.subr.bf16.mxu0 0
        %525 = vmatpush1.bf16.msra.mxu0 0
        %526 = vmatprep.subr.bf16.mxu0 0
        %527 = vmatpush1.bf16.msra.mxu0 0
        %528 = vmatprep.subr.bf16.mxu0 0
        %529 = vmatpush1.bf16.msra.mxu0 0
        %530 = vmatprep.subr.bf16.mxu0 0
        %531 = vmatpush1.bf16.msra.mxu0 0
        %532 = vmatprep.subr.bf16.mxu0 0
        %533 = vmatpush1.bf16.msra.mxu0 0
        %534 = vmatprep.subr.bf16.mxu0 0
        %535 = vmatpush1.bf16.msra.mxu0 %v520
        %536 = vmatprep.subr.bf16.mxu0 0
        %537 = vmatpush1.bf16.msra.mxu0 %v493
        %538 = vmatprep.subr.bf16.mxu0 0
        %539 = vmatpush2.bf16.msra.mxu0 0
        %540 = vmatprep.subr.bf16.mxu0 0
        %541 = vmatpush2.bf16.msra.mxu0 0
        %542 = vmatprep.subr.bf16.mxu0 0
        %543 = vmatpush2.bf16.msra.mxu0 0
        %544 = vmatprep.subr.bf16.mxu0 0
        %545 = vmatpush2.bf16.msra.mxu0 0
        %546 = vmatprep.subr.bf16.mxu0 0
        %547 = vmatpush2.bf16.msra.mxu0 0
        %548 = vmatprep.subr.bf16.mxu0 0
        %549 = vmatpush2.bf16.msra.mxu0 0
        %550 = vmatprep.subr.bf16.mxu0 0
        %551 = vmatpush2.bf16.msra.mxu0 0
        %552 = vmatprep.subr.bf16.mxu0 0
        %553 = vmatpush2.bf16.msra.mxu0 0
        %554 = vmatprep.mubr.bf16.mxu0 0
        %555 = vmatmul.mubr.bf16.gmra.mxu0 %v498
        %v556 = vpop.f32.mrf.mxu0
        %v557 = vadd.f32 %v453, %v556
        %v558 = vpop.f32.mrf.mxu0
        %v559 = vpop.f32.mrf.mxu0
        %v560 = vadd.f32 %v453, %v559
        %v561 = vpop.f32.mrf.mxu0
        %562 = vmatprep.mubr.bf16.mxu0 0
        %563 = vmatmul.mubr.bf16.gmra.mxu0 %v501
        %v564 = vpop.f32.mrf.mxu0
        %v565 = vadd.f32 %v453, %v564
        %v566 = vpop.f32.mrf.mxu0
        %v567 = vpop.f32.mrf.mxu0
        %v568 = vadd.f32 %v453, %v567
        %v569 = vpop.f32.mrf.mxu0
        %570 = vmatprep.mubr.bf16.mxu0 0
        %571 = vmatmul.mubr.bf16.gmra.mxu0 %v504
        %v572 = vpop.f32.mrf.mxu0
        %v573 = vadd.f32 %v453, %v572
        %v574 = vpop.f32.mrf.mxu0
        %v575 = vpop.f32.mrf.mxu0
        %v576 = vadd.f32 %v453, %v575
        %v577 = vpop.f32.mrf.mxu0
        %578 = vmatprep.mubr.bf16.mxu0 0
        %579 = vmatmul.mubr.bf16.gmra.mxu0 %v507
        %v580 = vpop.f32.mrf.mxu0
        %v581 = vadd.f32 %v453, %v580
        %v582 = vpop.f32.mrf.mxu0
        %v583 = vpop.f32.mrf.mxu0
        %v584 = vadd.f32 %v453, %v583
        %v585 = vpop.f32.mrf.mxu0
        %586 = vmatprep.mubr.bf16.mxu0 0
        %587 = vmatmul.mubr.bf16.gmra.mxu0 %v510
        %v588 = vpop.f32.mrf.mxu0
        %v589 = vadd.f32 %v453, %v588
        %v590 = vpop.f32.mrf.mxu0
        %v591 = vpop.f32.mrf.mxu0
        %v592 = vadd.f32 %v453, %v591
        %v593 = vpop.f32.mrf.mxu0
        %594 = vmatprep.mubr.bf16.mxu0 0
        %595 = vmatmul.mubr.bf16.gmra.mxu0 %v513
        %v596 = vpop.f32.mrf.mxu0
        %v597 = vadd.f32 %v453, %v596
        %v598 = vpop.f32.mrf.mxu0
        %v599 = vpop.f32.mrf.mxu0
        %v600 = vadd.f32 %v453, %v599
        %v601 = vpop.f32.mrf.mxu0
        %602 = vdwg.mxu0
        %v603 = vxor.u32 %v557, 2147483648
        %v604 = vxor.u32 %v560, 2147483648
        %v605 = vxor.u32 %v565, 2147483648
        %v606 = vxor.u32 %v568, 2147483648
        %v607 = vxor.u32 %v573, 2147483648
        %v608 = vxor.u32 %v576, 2147483648
        %v609 = vxor.u32 %v581, 2147483648
        %v610 = vxor.u32 %v584, 2147483648
        %v611 = vxor.u32 %v589, 2147483648
        %v612 = vxor.u32 %v592, 2147483648
        %v613 = vxor.u32 %v597, 2147483648
        %v614 = vxor.u32 %v600, 2147483648
        %v615 = vmul.f32 %v603, 1.442695
        %v616 = vpow.pop %v615
        %v617 = vmul.f32 %v604, 1.442695
        %v618 = vpow.pop %v617
        %v619 = vmul.f32 %v605, 1.442695
        %v620 = vpow.pop %v619
        %v621 = vmul.f32 %v606, 1.442695
        %v622 = vpow.pop %v621
        %v623 = vmul.f32 %v607, 1.442695
        %v624 = vpow.pop %v623
        %v625 = vmul.f32 %v608, 1.442695
        %v626 = vpow.pop %v625
        %v627 = vmul.f32 %v609, 1.442695
        %v628 = vpow.pop %v627
        %v629 = vmul.f32 %v610, 1.442695
        %v630 = vpow.pop %v629
        %v631 = vmul.f32 %v611, 1.442695
        %v632 = vpow.pop %v631
        %v633 = vmul.f32 %v612, 1.442695
        %v634 = vpow.pop %v633
        %v635 = vmul.f32 %v613, 1.442695
        %v636 = vpow.pop %v635
        %v637 = vmul.f32 %v614, 1.442695
        %v638 = vpow.pop %v637
        %v639 = vadd.f32 %v616, 1.0
        %v640 = vadd.f32 %v618, 1.0
        %v641 = vadd.f32 %v620, 1.0
        %v642 = vadd.f32 %v622, 1.0
        %v643 = vadd.f32 %v624, 1.0
        %v644 = vadd.f32 %v626, 1.0
        %v645 = vadd.f32 %v628, 1.0
        %v646 = vadd.f32 %v630, 1.0
        %v647 = vadd.f32 %v632, 1.0
        %v648 = vadd.f32 %v634, 1.0
        %v649 = vadd.f32 %v636, 1.0
        %v650 = vadd.f32 %v638, 1.0
        %v651 = vrcp.pop %v639
        %v652 = vmul.f32 1.0, %v651
        %v653 = vrcp.pop %v640
        %v654 = vmul.f32 1.0, %v653
        %v655 = vrcp.pop %v641
        %v656 = vmul.f32 1.0, %v655
        %v657 = vrcp.pop %v642
        %v658 = vmul.f32 1.0, %v657
        %v659 = vrcp.pop %v643
        %v660 = vmul.f32 1.0, %v659
        %v661 = vrcp.pop %v644
        %v662 = vmul.f32 1.0, %v661
        %v663 = vrcp.pop %v645
        %v664 = vmul.f32 1.0, %v663
        %v665 = vrcp.pop %v646
        %v666 = vmul.f32 1.0, %v665
        %v667 = vrcp.pop %v647
        %v668 = vmul.f32 1.0, %v667
        %v669 = vrcp.pop %v648
        %v670 = vmul.f32 1.0, %v669
        %v671 = vrcp.pop %v649
        %v672 = vmul.f32 1.0, %v671
        %v673 = vrcp.pop %v650
        %v674 = vmul.f32 1.0, %v673
        %v675 = vmul.f32 %v557, %v652
        %v676 = vmul.f32 %v560, %v654
        %v677 = vmul.f32 %v565, %v656
        %v678 = vmul.f32 %v568, %v658
        %v679 = vmul.f32 %v573, %v660
        %v680 = vmul.f32 %v576, %v662
        %v681 = vmul.f32 %v581, %v664
        %v682 = vmul.f32 %v584, %v666
        %v683 = vmul.f32 %v589, %v668
        %v684 = vmul.f32 %v592, %v670
        %v685 = vmul.f32 %v597, %v672
        %v686 = vmul.f32 %v600, %v674
        %v687 = vsel %vm425, 1, 0
        %v688 = vsel %vm426, 1, 0
        %v689 = vsel %vm427, 1, 0
        %v690 = vsel %vm428, 1, 0
        %v691 = vsel %vm429, 1, 0
        %v692 = vsel %vm430, 1, 0
        %v693 = vsel %vm431, 1, 0
        %v694 = vsel %vm432, 1, 0
        %v695 = vsel %vm433, 1, 0
        %v696 = vsel %vm434, 1, 0
        %v697 = vsel %vm435, 1, 0
        %v698 = vsel %vm436, 1, 0
        %vm699 = vcmp.eq.s32.totalorder %v687, 1
        %vm700 = vcmp.eq.s32.totalorder %v688, 1
        %vm701 = vcmp.eq.s32.totalorder %v689, 1
        %vm702 = vcmp.eq.s32.totalorder %v690, 1
        %vm703 = vcmp.eq.s32.totalorder %v691, 1
        %vm704 = vcmp.eq.s32.totalorder %v692, 1
        %vm705 = vcmp.eq.s32.totalorder %v693, 1
        %vm706 = vcmp.eq.s32.totalorder %v694, 1
        %vm707 = vcmp.eq.s32.totalorder %v695, 1
        %vm708 = vcmp.eq.s32.totalorder %v696, 1
        %vm709 = vcmp.eq.s32.totalorder %v697, 1
        %vm710 = vcmp.eq.s32.totalorder %v698, 1
        %v711 = vsel %vm699, %v675, 0.0
        %v712 = vsel %vm700, %v676, 0.0
        %v713 = vsel %vm701, %v677, 0.0
        %v714 = vsel %vm702, %v678, 0.0
        %v715 = vsel %vm703, %v679, 0.0
        %v716 = vsel %vm704, %v680, 0.0
        %v717 = vsel %vm705, %v681, 0.0
        %v718 = vsel %vm706, %v682, 0.0
        %v719 = vsel %vm707, %v683, 0.0
        %v720 = vsel %vm708, %v684, 0.0
        %v721 = vsel %vm709, %v685, 0.0
        %v722 = vsel %vm710, %v686, 0.0
        %v723 = vadd.f32 %v711, %v712
        %v724 = vadd.f32 %v723, %v713
        %v725 = vadd.f32 %v724, %v714
        %v726 = vadd.f32 %v725, %v715
        %v727 = vadd.f32 %v726, %v716
        %v728 = vadd.f32 %v727, %v717
        %v729 = vadd.f32 %v728, %v718
        %v730 = vadd.f32 %v729, %v719
        %v731 = vadd.f32 %v730, %v720
        %v732 = vadd.f32 %v731, %v721
        %v733 = vadd.f32 %v732, %v722
        %v734 = vrot.slane %v733, 4
        %v735 = vadd.f32 %v733, %v734
        %v736 = vrot.slane %v735, 2
        %v737 = vadd.f32 %v735, %v736
        %v738 = vrot.slane %v737, 1
        %v739 = vadd.f32 %v737, %v738
        %s740 = scalar_lea.vmem %s360, 48 [#allocation3]
        %v741 = vld [vmem:[%s740] sm:$0xf]
        %v742 = vld [vmem:[%s740 + $0x4] sm:$0xf]
        %v743 = vld [vmem:[%s740 + $0x8] sm:$0xf]
        %v744 = vld [vmem:[%s740 + $0xc] sm:$0xf]
        %v745 = vld [vmem:[%s740 + $0x10] sm:$0xf]
        %v746 = vld [vmem:[%s740 + $0x14] sm:$0xf]
        %v747 = vld [vmem:[%s740 + $0x18] sm:$0xf]
        %v748 = vld [vmem:[%s740 + $0x1c] sm:$0xf]
        %v749 = vld [vmem:[%s740 + $0x20] sm:$0xf]
        %v750 = vld [vmem:[%s740 + $0x24] sm:$0xf]
        %v751 = vld [vmem:[%s740 + $0x28] sm:$0xf]
        %v752 = vld [vmem:[%s740 + $0x2c] sm:$0xf]
        %v765 = vunpack.c.l.b16 %v741
        %v766 = vunpack.c.l.b16 %v742
        %v767 = vunpack.c.l.b16 %v743
        %v768 = vunpack.c.l.b16 %v744
        %v769 = vunpack.c.l.b16 %v745
        %v770 = vunpack.c.l.b16 %v746
        %v771 = vunpack.c.l.b16 %v747
        %v772 = vunpack.c.l.b16 %v748
        %v773 = vunpack.c.l.b16 %v749
        %v774 = vunpack.c.l.b16 %v750
        %v775 = vunpack.c.l.b16 %v751
        %v776 = vunpack.c.l.b16 %v752
        %v777 = vpack.c.b16 %v766, %v765
        %v778 = vpack.c.b16 %v768, %v767
        %v779 = vpack.c.b16 %v770, %v769
        %v780 = vpack.c.b16 %v772, %v771
        %v781 = vpack.c.b16 %v774, %v773
        %v782 = vpack.c.b16 %v776, %v775
        %v784 = vsel %vm496, %v777, 0
        %v787 = vsel %vm496, %v778, 0
        %v790 = vsel %vm496, %v779, 0
        %v793 = vsel %vm496, %v780, 0
        %v796 = vsel %vm496, %v781, 0
        %v799 = vsel %vm496, %v782, 0
        %801 = vmatprep.subr.bf16.mxu0 0
        %802 = vmatpush1.bf16.msra.mxu0 0
        %803 = vmatprep.subr.bf16.mxu0 0
        %804 = vmatpush1.bf16.msra.mxu0 0
        %805 = vmatprep.subr.bf16.mxu0 0
        %806 = vmatpush1.bf16.msra.mxu0 0
        %807 = vmatprep.subr.bf16.mxu0 0
        %808 = vmatpush1.bf16.msra.mxu0 0
        %809 = vmatprep.subr.bf16.mxu0 0
        %810 = vmatpush1.bf16.msra.mxu0 0
        %811 = vmatprep.subr.bf16.mxu0 0
        %812 = vmatpush1.bf16.msra.mxu0 0
        %813 = vmatprep.subr.bf16.mxu0 0
        %814 = vmatpush1.bf16.msra.mxu0 %v520
        %815 = vmatprep.subr.bf16.mxu0 0
        %816 = vmatpush1.bf16.msra.mxu0 %v493
        %817 = vmatprep.subr.bf16.mxu0 0
        %818 = vmatpush2.bf16.msra.mxu0 0
        %819 = vmatprep.subr.bf16.mxu0 0
        %820 = vmatpush2.bf16.msra.mxu0 0
        %821 = vmatprep.subr.bf16.mxu0 0
        %822 = vmatpush2.bf16.msra.mxu0 0
        %823 = vmatprep.subr.bf16.mxu0 0
        %824 = vmatpush2.bf16.msra.mxu0 0
        %825 = vmatprep.subr.bf16.mxu0 0
        %826 = vmatpush2.bf16.msra.mxu0 0
        %827 = vmatprep.subr.bf16.mxu0 0
        %828 = vmatpush2.bf16.msra.mxu0 0
        %829 = vmatprep.subr.bf16.mxu0 0
        %830 = vmatpush2.bf16.msra.mxu0 0
        %831 = vmatprep.subr.bf16.mxu0 0
        %832 = vmatpush2.bf16.msra.mxu0 0
        %833 = vmatprep.mubr.bf16.mxu0 0
        %834 = vmatmul.mubr.bf16.gmra.mxu0 %v784
        %v835 = vpop.f32.mrf.mxu0
        %v836 = vadd.f32 %v453, %v835
        %v837 = vpop.f32.mrf.mxu0
        %v838 = vpop.f32.mrf.mxu0
        %v839 = vadd.f32 %v453, %v838
        %v840 = vpop.f32.mrf.mxu0
        %841 = vmatprep.mubr.bf16.mxu0 0
        %842 = vmatmul.mubr.bf16.gmra.mxu0 %v787
        %v843 = vpop.f32.mrf.mxu0
        %v844 = vadd.f32 %v453, %v843
        %v845 = vpop.f32.mrf.mxu0
        %v846 = vpop.f32.mrf.mxu0
        %v847 = vadd.f32 %v453, %v846
        %v848 = vpop.f32.mrf.mxu0
        %849 = vmatprep.mubr.bf16.mxu0 0
        %850 = vmatmul.mubr.bf16.gmra.mxu0 %v790
        %v851 = vpop.f32.mrf.mxu0
        %v852 = vadd.f32 %v453, %v851
        %v853 = vpop.f32.mrf.mxu0
        %v854 = vpop.f32.mrf.mxu0
        %v855 = vadd.f32 %v453, %v854
        %v856 = vpop.f32.mrf.mxu0
        %857 = vmatprep.mubr.bf16.mxu0 0
        %858 = vmatmul.mubr.bf16.gmra.mxu0 %v793
        %v859 = vpop.f32.mrf.mxu0
        %v860 = vadd.f32 %v453, %v859
        %v861 = vpop.f32.mrf.mxu0
        %v862 = vpop.f32.mrf.mxu0
        %v863 = vadd.f32 %v453, %v862
        %v864 = vpop.f32.mrf.mxu0
        %865 = vmatprep.mubr.bf16.mxu0 0
        %866 = vmatmul.mubr.bf16.gmra.mxu0 %v796
        %v867 = vpop.f32.mrf.mxu0
        %v868 = vadd.f32 %v453, %v867
        %v869 = vpop.f32.mrf.mxu0
        %v870 = vpop.f32.mrf.mxu0
        %v871 = vadd.f32 %v453, %v870
        %v872 = vpop.f32.mrf.mxu0
        %873 = vmatprep.mubr.bf16.mxu0 0
        %874 = vmatmul.mubr.bf16.gmra.mxu0 %v799
        %v875 = vpop.f32.mrf.mxu0
        %v876 = vadd.f32 %v453, %v875
        %v877 = vpop.f32.mrf.mxu0
        %v878 = vpop.f32.mrf.mxu0
        %v879 = vadd.f32 %v453, %v878
        %v880 = vpop.f32.mrf.mxu0
        %881 = vdwg.mxu0
        %v882 = vxor.u32 %v836, 2147483648
        %v883 = vxor.u32 %v839, 2147483648
        %v884 = vxor.u32 %v844, 2147483648
        %v885 = vxor.u32 %v847, 2147483648
        %v886 = vxor.u32 %v852, 2147483648
        %v887 = vxor.u32 %v855, 2147483648
        %v888 = vxor.u32 %v860, 2147483648
        %v889 = vxor.u32 %v863, 2147483648
        %v890 = vxor.u32 %v868, 2147483648
        %v891 = vxor.u32 %v871, 2147483648
        %v892 = vxor.u32 %v876, 2147483648
        %v893 = vxor.u32 %v879, 2147483648
        %v894 = vmul.f32 %v882, 1.442695
        %v895 = vpow.pop %v894
        %v896 = vmul.f32 %v883, 1.442695
        %v897 = vpow.pop %v896
        %v898 = vmul.f32 %v884, 1.442695
        %v899 = vpow.pop %v898
        %v900 = vmul.f32 %v885, 1.442695
        %v901 = vpow.pop %v900
        %v902 = vmul.f32 %v886, 1.442695
        %v903 = vpow.pop %v902
        %v904 = vmul.f32 %v887, 1.442695
        %v905 = vpow.pop %v904
        %v906 = vmul.f32 %v888, 1.442695
        %v907 = vpow.pop %v906
        %v908 = vmul.f32 %v889, 1.442695
        %v909 = vpow.pop %v908
        %v910 = vmul.f32 %v890, 1.442695
        %v911 = vpow.pop %v910
        %v912 = vmul.f32 %v891, 1.442695
        %v913 = vpow.pop %v912
        %v914 = vmul.f32 %v892, 1.442695
        %v915 = vpow.pop %v914
        %v916 = vmul.f32 %v893, 1.442695
        %v917 = vpow.pop %v916
        %v918 = vadd.f32 %v895, 1.0
        %v919 = vadd.f32 %v897, 1.0
        %v920 = vadd.f32 %v899, 1.0
        %v921 = vadd.f32 %v901, 1.0
        %v922 = vadd.f32 %v903, 1.0
        %v923 = vadd.f32 %v905, 1.0
        %v924 = vadd.f32 %v907, 1.0
        %v925 = vadd.f32 %v909, 1.0
        %v926 = vadd.f32 %v911, 1.0
        %v927 = vadd.f32 %v913, 1.0
        %v928 = vadd.f32 %v915, 1.0
        %v929 = vadd.f32 %v917, 1.0
        %v930 = vrcp.pop %v918
        %v931 = vmul.f32 1.0, %v930
        %v932 = vrcp.pop %v919
        %v933 = vmul.f32 1.0, %v932
        %v934 = vrcp.pop %v920
        %v935 = vmul.f32 1.0, %v934
        %v936 = vrcp.pop %v921
        %v937 = vmul.f32 1.0, %v936
        %v938 = vrcp.pop %v922
        %v939 = vmul.f32 1.0, %v938
        %v940 = vrcp.pop %v923
        %v941 = vmul.f32 1.0, %v940
        %v942 = vrcp.pop %v924
        %v943 = vmul.f32 1.0, %v942
        %v944 = vrcp.pop %v925
        %v945 = vmul.f32 1.0, %v944
        %v946 = vrcp.pop %v926
        %v947 = vmul.f32 1.0, %v946
        %v948 = vrcp.pop %v927
        %v949 = vmul.f32 1.0, %v948
        %v950 = vrcp.pop %v928
        %v951 = vmul.f32 1.0, %v950
        %v952 = vrcp.pop %v929
        %v953 = vmul.f32 1.0, %v952
        %v954 = vmul.f32 %v836, %v931
        %v955 = vmul.f32 %v839, %v933
        %v956 = vmul.f32 %v844, %v935
        %v957 = vmul.f32 %v847, %v937
        %v958 = vmul.f32 %v852, %v939
        %v959 = vmul.f32 %v855, %v941
        %v960 = vmul.f32 %v860, %v943
        %v961 = vmul.f32 %v863, %v945
        %v962 = vmul.f32 %v868, %v947
        %v963 = vmul.f32 %v871, %v949
        %v964 = vmul.f32 %v876, %v951
        %v965 = vmul.f32 %v879, %v953
        %v966 = vsel %vm699, %v954, 0.0
        %v967 = vsel %vm700, %v955, 0.0
        %v968 = vsel %vm701, %v956, 0.0
        %v969 = vsel %vm702, %v957, 0.0
        %v970 = vsel %vm703, %v958, 0.0
        %v971 = vsel %vm704, %v959, 0.0
        %v972 = vsel %vm705, %v960, 0.0
        %v973 = vsel %vm706, %v961, 0.0
        %v974 = vsel %vm707, %v962, 0.0
        %v975 = vsel %vm708, %v963, 0.0
        %v976 = vsel %vm709, %v964, 0.0
        %v977 = vsel %vm710, %v965, 0.0
        %v978 = vadd.f32 %v966, %v967
        %v979 = vadd.f32 %v978, %v968
        %v980 = vadd.f32 %v979, %v969
        %v981 = vadd.f32 %v980, %v970
        %v982 = vadd.f32 %v981, %v971
        %v983 = vadd.f32 %v982, %v972
        %v984 = vadd.f32 %v983, %v973
        %v985 = vadd.f32 %v984, %v974
        %v986 = vadd.f32 %v985, %v975
        %v987 = vadd.f32 %v986, %v976
        %v988 = vadd.f32 %v987, %v977
        %v989 = vrot.slane %v988, 4
        %v990 = vadd.f32 %v988, %v989
        %v991 = vrot.slane %v990, 2
        %v992 = vadd.f32 %v990, %v991
        %v993 = vrot.slane %v992, 1
        %v994 = vadd.f32 %v992, %v993
        %vm995 = vcmask 1040384
        %v996 = vsel %vm995, %v739, %v994
        %v997 = vld [vmem:[#allocation2] sm:$0x3]
        %v998 = vadd.f32 %v997, %v996
        %999 = vst [vmem:[#allocation2] sm:$0x3] %v998
        %p1000 = scmp.eq.s32.totalorder %s23, 2
        // Predicated region
        $region90: #{tpu_custom_call.1} parent=76 // pred_check
          %p1001 = pneg %p1000
        $region91: #{tpu_custom_call.1} parent=76 // pred_check_branch
          %1003 = sbr.rel (%p1001) target = $region93
        $region92: #{tpu_custom_call.1} parent=76 // pred_region
          %v1004 = vld [vmem:[#allocation2] sm:$0x3]
          %v1005 = vld [vmem:[#allocation4] sm:$0xff]
          %v1006 = vld [vmem:[#allocation4 + $0x8] sm:$0xff]
          %v1007 = vld [vmem:[#allocation4 + $0x10] sm:$0xff]
          %v1008 = vld [vmem:[#allocation4 + $0x18] sm:$0xff]
          %v1009 = vld [vmem:[#allocation4 + $0x20] sm:$0xff]
          %v1010 = vld [vmem:[#allocation4 + $0x28] sm:$0xff]
          %v1011 = vld [vmem:[#allocation4 + $0x30] sm:$0xff]
          %v1012 = vld [vmem:[#allocation4 + $0x38] sm:$0xff]
          %v1013 = vld [vmem:[#allocation4 + $0x40] sm:$0xff]
          %v1014 = vld [vmem:[#allocation4 + $0x48] sm:$0xff]
          %v1015 = vld [vmem:[#allocation4 + $0x50] sm:$0xff]
          %v1016 = vld [vmem:[#allocation4 + $0x58] sm:$0xff]
          %v1017 = vld [vmem:[#allocation4 + $0x60] sm:$0xff]
          %v1018 = vld [vmem:[#allocation4 + $0x68] sm:$0xff]
          %v1019 = vld [vmem:[#allocation4 + $0x70] sm:$0xff]
          %v1020 = vld [vmem:[#allocation4 + $0x78] sm:$0xff]
          %v1021 = vld [vmem:[#allocation4 + $0x80] sm:$0xff]
          %v1022 = vld [vmem:[#allocation4 + $0x88] sm:$0xff]
          %v1023 = vld [vmem:[#allocation4 + $0x90] sm:$0xff]
          %v1024 = vld [vmem:[#allocation4 + $0x98] sm:$0xff]
          %v1025 = vld [vmem:[#allocation4 + $0xa0] sm:$0xff]
          %v1026 = vld [vmem:[#allocation4 + $0xa8] sm:$0xff]
          %v1027 = vld [vmem:[#allocation4 + $0xb0] sm:$0xff]
          %v1028 = vld [vmem:[#allocation4 + $0xb8] sm:$0xff]
          %v1029 = vld [vmem:[#allocation4 + $0xc0] sm:$0xff]
          %v1030 = vld [vmem:[#allocation4 + $0xc8] sm:$0xff]
          %v1031 = vld [vmem:[#allocation4 + $0xd0] sm:$0xff]
          %v1032 = vld [vmem:[#allocation4 + $0xd8] sm:$0xff]
          %v1033 = vld [vmem:[#allocation4 + $0xe0] sm:$0xff]
          %v1034 = vld [vmem:[#allocation4 + $0xe8] sm:$0xff]
          %v1035 = vld [vmem:[#allocation4 + $0xf0] sm:$0xff]
          %v1036 = vld [vmem:[#allocation4 + $0xf8] sm:$0xff]
          %v1037 = vld [vmem:[#allocation4 + $0x100] sm:$0xff]
          %v1038 = vld [vmem:[#allocation4 + $0x108] sm:$0xff]
          %v1039 = vld [vmem:[#allocation4 + $0x110] sm:$0xff]
          %v1040 = vld [vmem:[#allocation4 + $0x118] sm:$0xff]
          %v1041 = vld [vmem:[#allocation4 + $0x120] sm:$0xff]
          %v1042 = vld [vmem:[#allocation4 + $0x128] sm:$0xff]
          %v1043 = vld [vmem:[#allocation4 + $0x130] sm:$0xff]
          %v1044 = vld [vmem:[#allocation4 + $0x138] sm:$0xff]
          %v1045 = vld [vmem:[#allocation4 + $0x140] sm:$0xff]
          %v1046 = vld [vmem:[#allocation4 + $0x148] sm:$0xff]
          %v1047 = vld [vmem:[#allocation4 + $0x150] sm:$0xff]
          %v1048 = vld [vmem:[#allocation4 + $0x158] sm:$0xff]
          %v1049 = vld [vmem:[#allocation4 + $0x160] sm:$0xff]
          %v1050 = vld [vmem:[#allocation4 + $0x168] sm:$0xff]
          %v1051 = vld [vmem:[#allocation4 + $0x170] sm:$0xff]
          %v1052 = vld [vmem:[#allocation4 + $0x178] sm:$0xff]
          %v1053 = vld [vmem:[%s4] sm:$0x7]
          %v1055 = vlaneseq
          %v1056 = vshrl.u32 %v1055, 7
          %v1057 = vsub.s32 0, %v1056
          %v1058 = vrot.slane %v1053, %v1057
          %v1059 = vlaneseq
          %v1060 = vshrl.u32 %v1059, 7
          %v1061 = vsub.s32 1, %v1060
          %v1062 = vrot.slane %v1053, %v1061
          %v1063 = vlaneseq
          %v1064 = vshrl.u32 %v1063, 7
          %v1065 = vsub.s32 2, %v1064
          %v1066 = vrot.slane %v1053, %v1065
          %1070 = vmatprep.subr.mxu0 %v1051
          %1071 = vmatpush1.msra.mxu0 %v1050
          %1072 = vmatprep.subr.mxu0 %v1048
          %1073 = vmatpush1.msra.mxu0 %v1047
          %1074 = vmatprep.subr.mxu0 %v1045
          %1075 = vmatpush1.msra.mxu0 %v1044
          %1076 = vmatprep.subr.mxu0 %v1042
          %1077 = vmatpush1.msra.mxu0 %v1041
          %1078 = vmatprep.subr.mxu0 %v1039
          %1079 = vmatpush1.msra.mxu0 %v1038
          %1080 = vmatprep.subr.mxu0 %v1036
          %1081 = vmatpush1.msra.mxu0 %v1035
          %1082 = vmatprep.subr.mxu0 %v1033
          %1083 = vmatpush1.msra.mxu0 %v1032
          %1084 = vmatprep.subr.mxu0 %v1030
          %1085 = vmatpush1.msra.mxu0 %v1029
          %1086 = vmatprep.subr.mxu0 %v1027
          %1087 = vmatpush1.msra.mxu0 %v1026
          %1088 = vmatprep.subr.mxu0 %v1024
          %1089 = vmatpush1.msra.mxu0 %v1023
          %1090 = vmatprep.subr.mxu0 %v1021
          %1091 = vmatpush1.msra.mxu0 %v1020
          %1092 = vmatprep.subr.mxu0 %v1018
          %1093 = vmatpush1.msra.mxu0 %v1017
          %1094 = vmatprep.subr.mxu0 %v1015
          %1095 = vmatpush1.msra.mxu0 %v1014
          %1096 = vmatprep.subr.mxu0 %v1012
          %1097 = vmatpush1.msra.mxu0 %v1011
          %1098 = vmatprep.subr.mxu0 %v1009
          %1099 = vmatpush1.msra.mxu0 %v1008
          %1100 = vmatprep.subr.mxu0 %v1006
          %1101 = vmatpush1.msra.mxu0 %v1005
          %1102 = vmatprep.subr.mxu0 0.0
          %1103 = vmatpush2.msra.mxu0 0.0
          %1104 = vmatprep.subr.mxu0 0.0
          %1105 = vmatpush2.msra.mxu0 0.0
          %1106 = vmatprep.subr.mxu0 0.0
          %1107 = vmatpush2.msra.mxu0 0.0
          %1108 = vmatprep.subr.mxu0 0.0
          %1109 = vmatpush2.msra.mxu0 0.0
          %1110 = vmatprep.subr.mxu0 0.0
          %1111 = vmatpush2.msra.mxu0 0.0
          %1112 = vmatprep.subr.mxu0 0.0
          %1113 = vmatpush2.msra.mxu0 0.0
          %1114 = vmatprep.subr.mxu0 0.0
          %1115 = vmatpush2.msra.mxu0 0.0
          %1116 = vmatprep.subr.mxu0 0.0
          %1117 = vmatpush2.msra.mxu0 0.0
          %1118 = vmatprep.subr.mxu0 0.0
          %1119 = vmatpush2.msra.mxu0 0.0
          %1120 = vmatprep.subr.mxu0 0.0
          %1121 = vmatpush2.msra.mxu0 0.0
          %1122 = vmatprep.subr.mxu0 0.0
          %1123 = vmatpush2.msra.mxu0 0.0
          %1124 = vmatprep.subr.mxu0 0.0
          %1125 = vmatpush2.msra.mxu0 0.0
          %1126 = vmatprep.subr.mxu0 0.0
          %1127 = vmatpush2.msra.mxu0 0.0
          %1128 = vmatprep.subr.mxu0 0.0
          %1129 = vmatpush2.msra.mxu0 0.0
          %1130 = vmatprep.subr.mxu0 0.0
          %1131 = vmatpush2.msra.mxu0 0.0
          %1132 = vmatprep.subr.mxu0 0.0
          %1133 = vmatpush2.msra.mxu0 0.0
          %1134 = vmatprep.mubr.f32.mxu0 0.0
          %1135 = vmatmul.mubr.f32.gmra.mxu0 %v1004
          %v1136 = vpop.f32.mrf.mxu0
          %v1137 = vadd.f32 %v1058, %v1136
          %v1138 = vpop.f32.mrf.mxu0
          %v1139 = vadd.f32 %v1062, %v1138
          %1140 = vdwg.mxu0
          %1141 = vmatprep.subr.mxu0 0.0
          %1142 = vmatpush1.msra.mxu0 %v1052
          %1143 = vmatprep.subr.mxu0 0.0
          %1144 = vmatpush1.msra.mxu0 %v1049
          %1145 = vmatprep.subr.mxu0 0.0
          %1146 = vmatpush1.msra.mxu0 %v1046
          %1147 = vmatprep.subr.mxu0 0.0
          %1148 = vmatpush1.msra.mxu0 %v1043
          %1149 = vmatprep.subr.mxu0 0.0
          %1150 = vmatpush1.msra.mxu0 %v1040
          %1151 = vmatprep.subr.mxu0 0.0
          %1152 = vmatpush1.msra.mxu0 %v1037
          %1153 = vmatprep.subr.mxu0 0.0
          %1154 = vmatpush1.msra.mxu0 %v1034
          %1155 = vmatprep.subr.mxu0 0.0
          %1156 = vmatpush1.msra.mxu0 %v1031
          %1157 = vmatprep.subr.mxu0 0.0
          %1158 = vmatpush1.msra.mxu0 %v1028
          %1159 = vmatprep.subr.mxu0 0.0
          %1160 = vmatpush1.msra.mxu0 %v1025
          %1161 = vmatprep.subr.mxu0 0.0
          %1162 = vmatpush1.msra.mxu0 %v1022
          %1163 = vmatprep.subr.mxu0 0.0
          %1164 = vmatpush1.msra.mxu0 %v1019
          %1165 = vmatprep.subr.mxu0 0.0
          %1166 = vmatpush1.msra.mxu0 %v1016
          %1167 = vmatprep.subr.mxu0 0.0
          %1168 = vmatpush1.msra.mxu0 %v1013
          %1169 = vmatprep.subr.mxu0 0.0
          %1170 = vmatpush1.msra.mxu0 %v1010
          %1171 = vmatprep.subr.mxu0 0.0
          %1172 = vmatpush1.msra.mxu0 %v1007
          %1173 = vmatprep.subr.mxu0 0.0
          %1174 = vmatpush2.msra.mxu0 0.0
          %1175 = vmatprep.subr.mxu0 0.0
          %1176 = vmatpush2.msra.mxu0 0.0
          %1177 = vmatprep.subr.mxu0 0.0
          %1178 = vmatpush2.msra.mxu0 0.0
          %1179 = vmatprep.subr.mxu0 0.0
          %1180 = vmatpush2.msra.mxu0 0.0
          %1181 = vmatprep.subr.mxu0 0.0
          %1182 = vmatpush2.msra.mxu0 0.0
          %1183 = vmatprep.subr.mxu0 0.0
          %1184 = vmatpush2.msra.mxu0 0.0
          %1185 = vmatprep.subr.mxu0 0.0
          %1186 = vmatpush2.msra.mxu0 0.0
          %1187 = vmatprep.subr.mxu0 0.0
          %1188 = vmatpush2.msra.mxu0 0.0
          %1189 = vmatprep.subr.mxu0 0.0
          %1190 = vmatpush2.msra.mxu0 0.0
          %1191 = vmatprep.subr.mxu0 0.0
          %1192 = vmatpush2.msra.mxu0 0.0
          %1193 = vmatprep.subr.mxu0 0.0
          %1194 = vmatpush2.msra.mxu0 0.0
          %1195 = vmatprep.subr.mxu0 0.0
          %1196 = vmatpush2.msra.mxu0 0.0
          %1197 = vmatprep.subr.mxu0 0.0
          %1198 = vmatpush2.msra.mxu0 0.0
          %1199 = vmatprep.subr.mxu0 0.0
          %1200 = vmatpush2.msra.mxu0 0.0
          %1201 = vmatprep.subr.mxu0 0.0
          %1202 = vmatpush2.msra.mxu0 0.0
          %1203 = vmatprep.subr.mxu0 0.0
          %1204 = vmatpush2.msra.mxu0 0.0
          %1205 = vmatprep.mubr.f32.mxu0 0.0
          %1206 = vmatmul.mubr.f32.gmra.mxu0 %v1004
          %v1207 = vpop.f32.mrf.mxu0
          %v1208 = vadd.f32 %v1066, %v1207
          %v1209 = vpop.f32.mrf.mxu0
          %1210 = vdwg.mxu0
          %v1214 = vcombine.low %v1137, %v1139
          %v1216 = vunpack.c.l.s4 1966171168
          %v1217 = vunpack.c.0.s8 %v1216
          %v1218 = vlaneseq
          %v1219 = vshrl.u32 %v1218, 7
          %v1220 = vsub.s32 %v1217, %v1219
          %v1221 = vrot.slane %v1214, %v1220
          %v1223 = vunpack.c.l.s4 1966171168
          %v1224 = vunpack.c.0.s8 %v1223
          %v1225 = vlaneseq
          %v1226 = vshrl.u32 %v1225, 7
          %v1227 = vsub.s32 %v1224, %v1226
          %v1228 = vrot.slane %v1208, %v1227
          %v1229 = vcombine.low %v1221, %v1228
          %v1230 = vcombine.high %v1221, %v1228
          %v1232 = vunpack.c.l.s4 1966171168
          %v1233 = vunpack.c.0.s8 %v1232
          %v1234 = vlaneseq
          %v1235 = vshrl.u32 %v1234, 7
          %v1236 = vsub.s32 %v1233, %v1235
          %v1237 = vrot.slane %v1229, %v1236
          %v1239 = vunpack.c.l.s4 1966171168
          %v1240 = vunpack.c.0.s8 %v1239
          %v1241 = vlaneseq
          %v1242 = vshrl.u32 %v1241, 7
          %v1243 = vsub.s32 %v1240, %v1242
          %v1244 = vrot.slane %v1230, %v1243
          %v1247 = vlaneseq
          %vm1248 = vcmp.ge.s32.totalorder %v1247, 0
          %vm1249 = vcmp.lt.s32.totalorder %v1247, 384
          %vm1250 = vmand %vm1248, %vm1249
          %1251 = vst.msk [vmem:[#allocation7] sm:$0x7] %vm1250, %v1237
          %1252 = vst.msk [vmem:[#allocation7 + $0x3] sm:$0x7] %vm1250, %v1244
        $region93: #{tpu_custom_call.1} parent=76 // pred_fallthru
          _
        // Predicated region
        $region94: #{tpu_custom_call.1} parent=76 // pred_check
          %p1253 = pneg %p160
        $region95: #{tpu_custom_call.1} parent=76 // pred_check_branch
          %1255 = sbr.rel (%p1253) target = $region97
        $region96: #{tpu_custom_call.1} parent=76 // pred_region
          %s1256 = smul.u32 2, %s22
          %s1258 = ssub.s32 96, 96
          %1259 = vsyncadd [#allocation6], %s1258
          %s1260 = smul.addr %s1256, 3
          %s1261 = smul.addr %s1260, 16
          %s1262 = scalar_lea.hbm %s5, %s1261
          %s1263 = sshll.u32 [#allocation7], 4
          %s1264 = int_to_ptr.vmem [resolvable:$true] %s1263
          %1269 = dma.vmem_to_hbm [thread:$0]  %s1264, 96, %s1262, [#allocation6], 48, 48, 3
        $region97: #{tpu_custom_call.1} parent=76 // pred_fallthru
          _
        // Predicated region
        $region98: #{tpu_custom_call.1} parent=76 // pred_check
          %p1270 = pneg %p160
        $region99: #{tpu_custom_call.1} parent=76 // pred_check_branch
          %1272 = sbr.rel (%p1270) target = $region101
        $region100: #{tpu_custom_call.1} parent=76 // pred_region
          %1273 = dma.done [#allocation6], 96
        $region101: #{tpu_custom_call.1} parent=76 // pred_fallthru
          _
      $region77: #{tpu_custom_call.1} parent=5 // pred_fallthru
        _
      %p1274 = scmp.le.s32.totalorder 2, %s13
      // Predicated region
      $region102: #{tpu_custom_call.1} parent=5 // pred_check
        %p1275 = pneg %p1274
      $region103: #{tpu_custom_call.1} parent=5 // pred_check_branch
        %1277 = sbr.rel (%p1275) target = $region105
      $region104: #{tpu_custom_call.1} parent=5 // pred_region
        %s1278 = ssub.s32 %s13, 2
      $region105: #{tpu_custom_call.1} parent=5 // pred_fallthru
        _
    $region6: #{tpu_custom_call.1} parent=1 // loop_footer
      %s17 = sadd.s32 1, %s13
    $region7: #{tpu_custom_call.1} parent=1 // loop_footer_branch
      %12 = sbr.rel target = $region3
    $region8: #{tpu_custom_call.1} parent=1 // loop_exit
      _
    %1279 = vsyncpa [#allocation5], 1
    %s1280 = scalar_lea.sflag [#allocation5], 1
    %1281 = vsyncpa %s1280, 1
    %1282 = vsyncpa [#allocation6], 1
    %s1283 = scalar_lea.sflag [#allocation6], 1
    %1284 = vsyncpa %s1283, 1

</llo_original>
